<compile_context>
chip_gen: v6e
topology: v6e:2x2x1
jax: 0.10.0
libtpu: 0.0.40
codegen_flags: <defaults>
</compile_context>

<pallas_src>
import functools

import jax
import jax.numpy as jnp
from jax import lax
from jax.experimental import pallas as pl
from jax.experimental.pallas import tpu as pltpu

_EPS = 1e-15          # hyptorch MIN_NORM
_BALL_EPS = 1e-3      # hyptorch float32 ball-boundary epsilon


# ---------------- shared (kernel + reference) hyperbolic helpers -------------
def _artanh(x):
    x = jnp.clip(x, -1.0 + 1e-5, 1.0 - 1e-5)
    return 0.5 * jnp.log((1.0 + x) / (1.0 - x))


def _row_norm(x):
    return jnp.maximum(jnp.sqrt(jnp.sum(x * x, axis=-1, keepdims=True)), _EPS)


def _project(x, c):
    norm = _row_norm(x)
    maxnorm = (1.0 - _BALL_EPS) / (c ** 0.5)
    return jnp.where(norm > maxnorm, x / norm * maxnorm, x)


def _mobius_add(x, y, c):
    x2 = jnp.sum(x * x, axis=-1, keepdims=True)
    y2 = jnp.sum(y * y, axis=-1, keepdims=True)
    xy = jnp.sum(x * y, axis=-1, keepdims=True)
    num = (1.0 + 2.0 * c * xy + c * y2) * x + (1.0 - c * x2) * y
    denom = 1.0 + 2.0 * c * xy + c * c * x2 * y2
    return num / jnp.maximum(denom, _EPS)


def _expmap0(u, c):
    sqrt_c = c ** 0.5
    u_norm = _row_norm(u)
    return jnp.tanh(sqrt_c * u_norm) * u / (sqrt_c * u_norm)


# ------------------------------- Pallas kernel -------------------------------
def _pa_kernel(x_ref, wpa_ref, wh_ref, bias_ref, o_ref, *, c):
    sqrt_c = c ** 0.5

    # pa: 1x1 conv over (tm, D) rows == matmul on the MXU (f32 accumulate).
    y = jnp.dot(x_ref[...], wpa_ref[...], preferred_element_type=jnp.float32)

    # HypLinear's Mx. If the weights were handed in as bf16, feed the MXU bf16
    # operands; the accumulator and the whole hyperbolic epilogue stay f32.
    mx = jnp.dot(y.astype(wh_ref.dtype), wh_ref[...],
                 preferred_element_type=jnp.float32)

    # mobius_matvec (hyptorch): row norms are lane reductions (XLU), tanh /
    # artanh go to the EUP, everything elementwise on the VPU.
    y_norm = _row_norm(y)
    mx_norm = _row_norm(mx)
    res = (jnp.tanh(mx_norm / y_norm * _artanh(sqrt_c * y_norm))
           * mx / (mx_norm * sqrt_c))
    zero_rows = jnp.sum(jnp.abs(mx), axis=-1, keepdims=True) <= 0.0
    mv = jnp.where(zero_rows, 0.0, res)
    mv = _project(mv, c)

    # mobius_add with the pre-exp-mapped hyperbolic bias, then final project.
    b = jnp.broadcast_to(bias_ref[...], mv.shape)
    out = _project(_mobius_add(mv, b, c), c)

    o_ref[...] = out.astype(o_ref.dtype)


# --------------------------------- wrapper -----------------------------------
def pa_forward(x, w_pa, w_h, b_h, c, *, tm=512, bf16_matmul=False):
    """y = HypLinear(conv2d(x, w_pa 1x1).flatten(1)) on the Poincare ball.

    x    : (N, D) or (N, D, 1, 1) features
    w_pa : (D, D, 1, 1) pa conv weight
    w_h  : (D, D)  HypLinear weight
    b_h  : (D,)    HypLinear bias
    c    : float   curvature (args['test.c'])
    """
    if x.ndim == 4:
        assert x.shape[2] == 1 and x.shape[3] == 1, "pa expects 1x1 spatial input"
        x = x.reshape(x.shape[0], x.shape[1])
    N, D = x.shape
    assert w_pa.shape == (D, D, 1, 1)
    assert w_h.shape == (D, D)
    assert b_h.shape == (D,)
    c = float(c)
    out_dtype = x.dtype

    # Re-layout weights so both matmuls are row-major (tm, D) @ (D, D).
    wpa_t = jnp.transpose(w_pa[:, :, 0, 0])            # (D_in, D_out)
    wh_t = jnp.transpose(w_h)                          # (D_in, D_out)
    # Hyperbolic bias is a per-call constant vector: exp-map it once outside.
    bias_h = _expmap0(b_h.astype(jnp.float32).reshape(1, D), c)

    if bf16_matmul:
        # Halve HBM/VMEM bytes of the MXU operands (v6e/v7x); acc stays f32.
        x = x.astype(jnp.bfloat16)
        wpa_t = wpa_t.astype(jnp.bfloat16)
        wh_t = wh_t.astype(jnp.bfloat16)

    # Row tiling: cdiv grid + zero padding (no "N % tm == 0" assert).
    tm = max(8, ((min(tm, N) + 7) // 8) * 8)
    n_tiles = pl.cdiv(N, tm)
    Mp = n_tiles * tm
    if Mp != N:
        x = jnp.pad(x, ((0, Mp - N), (0, 0)))

    out = pl.pallas_call(
        functools.partial(_pa_kernel, c=c),
        out_shape=jax.ShapeDtypeStruct((Mp, D), out_dtype),
        grid_spec=pltpu.PrefetchScalarGridSpec(
            num_scalar_prefetch=0,
            grid=(n_tiles,),
            in_specs=[
                pl.BlockSpec((tm, D), lambda i: (i, 0)),   # feature row tile
                pl.BlockSpec((D, D), lambda i: (0, 0)),    # pa conv weight (resident)
                pl.BlockSpec((D, D), lambda i: (0, 0)),    # HypLinear weight (resident)
                pl.BlockSpec((1, D), lambda i: (0, 0)),    # exp-mapped bias (resident)
            ],
            out_specs=pl.BlockSpec((tm, D), lambda i: (i, 0)),
        ),
        compiler_params=pltpu.CompilerParams(
            dimension_semantics=("parallel",)),
    )(x, wpa_t, wh_t, bias_h)

    return out[:N]


# ------------------------------ plain-JAX reference --------------------------
def pa_reference(x, w_pa, w_h, b_h, c):
    c = float(c)
    if x.ndim == 4:
        x = x.reshape(x.shape[0], x.shape[1])
    x = x.astype(jnp.float32)
    sqrt_c = c ** 0.5
    # F.conv2d with a 1x1 kernel on 1x1 spatial == x @ W^T; flatten(1) is a no-op.
    y = jnp.dot(x, w_pa[:, :, 0, 0].T, precision=lax.Precision.HIGHEST)
    y_norm = _row_norm(y)
    mx = jnp.dot(y, w_h.T, precision=lax.Precision.HIGHEST)
    mx_norm = _row_norm(mx)
    res = (jnp.tanh(mx_norm / y_norm * _artanh(sqrt_c * y_norm))
           * mx / (mx_norm * sqrt_c))
    mv = jnp.where(jnp.sum(jnp.abs(mx), axis=-1, keepdims=True) <= 0.0, 0.0, res)
    mv = _project(mv, c)
    bias = _expmap0(b_h.astype(jnp.float32).reshape(1, -1), c)
    return _project(_mobius_add(mv, bias, c), c)


if __name__ == "__main__":
    key = jax.random.PRNGKey(0)
    kx, kw, kb = jax.random.split(key, 3)

    # Small shapes consistent with the module: a few-shot episode of
    # pre-classifier features (N images, feat_dim-dimensional backbone output).
    N, D = 300, 128          # N not a multiple of tm -> exercises the padded tail
    curvature = 0.01         # args['test.c']

    x = 0.02 * jax.random.normal(kx, (N, D), dtype=jnp.float32)
    # pa weight: nn.Parameter(torch.ones(feat_dim, feat_dim, 1, 1)) at init.
    w_pa = jnp.ones((D, D, 1, 1), dtype=jnp.float32)
    # HypLinear weight/bias (kaiming-uniform-like small init).
    bound = 1.0 / (D ** 0.5)
    w_h = jax.random.uniform(kw, (D, D), jnp.float32, -bound, bound)
    b_h = jax.random.uniform(kb, (D,), jnp.float32, -bound, bound)

    # f32 path (3 grid steps at tm=128).
    y = jax.block_until_ready(pa_forward(x, w_pa, w_h, b_h, curvature, tm=128))
    y_ref = pa_reference(x, w_pa, w_h, b_h, curvature)
    assert y.shape == y_ref.shape == (N, D)
    assert jnp.allclose(y, y_ref, rtol=1e-3, atol=1e-3), (
        "max abs err (f32 path): %g" % float(jnp.max(jnp.abs(y - y_ref))))

    # bf16-operand / f32-accumulate path (v6e/v7x); epilogue stays f32.
    y_bf16 = jax.block_until_ready(
        pa_forward(x, w_pa, w_h, b_h, curvature, tm=128, bf16_matmul=True))
    assert jnp.allclose(y_bf16, y_ref, rtol=5e-2, atol=5e-2), (
        "max abs err (bf16 path): %g" % float(jnp.max(jnp.abs(y_bf16 - y_ref))))

    print("KERNEL_OK")
</pallas_src>

<mosaic_0001>
module attributes {stable_mosaic.version = 11 : i64} {
  func.func @_pa_kernel(%arg0: i32, %arg1: memref<128x128xf32, #tpu.memory_space<vmem>>, %arg2: memref<128x128xf32, #tpu.memory_space<vmem>>, %arg3: memref<128x128xf32, #tpu.memory_space<vmem>>, %arg4: memref<1x128xf32, #tpu.memory_space<vmem>>, %arg5: memref<128x128xf32, #tpu.memory_space<vmem>>) attributes {dimension_semantics = [#tpu.dimension_semantics<parallel>], iteration_bounds = array<i64: 3>, scalar_prefetch = 0 : i64, scratch_operands = 0 : i64, tpu.core_type = #tpu.core_type<tc>, window_params = [{transform_indices = @transform_0, window_bounds = array<i64: 128, 128>}, {pipeline_mode = #tpu.pipeline_mode<synchronous>, transform_indices = @transform_1, window_bounds = array<i64: 128, 128>}, {pipeline_mode = #tpu.pipeline_mode<synchronous>, transform_indices = @transform_2, window_bounds = array<i64: 128, 128>}, {pipeline_mode = #tpu.pipeline_mode<synchronous>, transform_indices = @transform_3, window_bounds = array<i64: 1, 128>}, {transform_indices = @transform_4, window_bounds = array<i64: 128, 128>}]} {
    %c0 = arith.constant 0 : index
    %c0_0 = arith.constant 0 : index
    %0 = vector.load %arg1[%c0, %c0_0] : memref<128x128xf32, #tpu.memory_space<vmem>>, vector<128x128xf32>
    %c0_1 = arith.constant 0 : index
    %c0_2 = arith.constant 0 : index
    %1 = vector.load %arg2[%c0_1, %c0_2] : memref<128x128xf32, #tpu.memory_space<vmem>>, vector<128x128xf32>
    %cst = arith.constant dense<0.000000e+00> : vector<128x128xf32>
    %2 = tpu.matmul %0, %1, %cst {dimension_numbers = #tpu.dot_dimension_numbers<[1], [0], [0], [1], [0, 0, 1, 1], [], []>} : vector<128x128xf32>, vector<128x128xf32>, vector<128x128xf32> -> vector<128x128xf32>
    %c0_3 = arith.constant 0 : index
    %c0_4 = arith.constant 0 : index
    %3 = vector.load %arg3[%c0_3, %c0_4] : memref<128x128xf32, #tpu.memory_space<vmem>>, vector<128x128xf32>
    %cst_5 = arith.constant dense<0.000000e+00> : vector<128x128xf32>
    %4 = tpu.matmul %2, %3, %cst_5 {dimension_numbers = #tpu.dot_dimension_numbers<[1], [0], [0], [1], [0, 0, 1, 1], [], []>} : vector<128x128xf32>, vector<128x128xf32>, vector<128x128xf32> -> vector<128x128xf32>
    %5 = arith.mulf %2, %2 : vector<128x128xf32>
    %cst_6 = arith.constant dense<0.000000e+00> : vector<128xf32>
    %6 = vector.multi_reduction <add>, %5, %cst_6 [1] : vector<128x128xf32> to vector<128xf32>
    %7 = vector.shape_cast %6 : vector<128xf32> to vector<128x1xf32>
    %8 = math.sqrt %7 : vector<128x1xf32>
    %cst_7 = arith.constant 1.000000e-15 : f32
    %9 = vector.broadcast %cst_7 : f32 to vector<128x1xf32>
    %10 = arith.maximumf %8, %9 : vector<128x1xf32>
    %11 = arith.mulf %4, %4 : vector<128x128xf32>
    %cst_8 = arith.constant dense<0.000000e+00> : vector<128xf32>
    %12 = vector.multi_reduction <add>, %11, %cst_8 [1] : vector<128x128xf32> to vector<128xf32>
    %13 = vector.shape_cast %12 : vector<128xf32> to vector<128x1xf32>
    %14 = math.sqrt %13 : vector<128x1xf32>
    %cst_9 = arith.constant 1.000000e-15 : f32
    %15 = vector.broadcast %cst_9 : f32 to vector<128x1xf32>
    %16 = arith.maximumf %14, %15 : vector<128x1xf32>
    %17 = arith.divf %16, %10 : vector<128x1xf32>
    %cst_10 = arith.constant 1.000000e-01 : f32
    %18 = vector.broadcast %cst_10 : f32 to vector<128x1xf32>
    %19 = arith.mulf %18, %10 : vector<128x1xf32>
    %cst_11 = arith.constant -0.999989986 : f32
    %cst_12 = arith.constant 0.999989986 : f32
    %20 = vector.broadcast %cst_11 : f32 to vector<128x1xf32>
    %21 = arith.maximumf %20, %19 : vector<128x1xf32>
    %22 = vector.broadcast %cst_12 : f32 to vector<128x1xf32>
    %23 = arith.minimumf %22, %21 : vector<128x1xf32>
    %cst_13 = arith.constant 1.000000e+00 : f32
    %24 = vector.broadcast %cst_13 : f32 to vector<128x1xf32>
    %25 = arith.addf %24, %23 : vector<128x1xf32>
    %cst_14 = arith.constant 1.000000e+00 : f32
    %26 = vector.broadcast %cst_14 : f32 to vector<128x1xf32>
    %27 = arith.subf %26, %23 : vector<128x1xf32>
    %28 = arith.divf %25, %27 : vector<128x1xf32>
    %29 = math.log %28 : vector<128x1xf32>
    %cst_15 = arith.constant 5.000000e-01 : f32
    %30 = vector.broadcast %cst_15 : f32 to vector<128x1xf32>
    %31 = arith.mulf %30, %29 : vector<128x1xf32>
    %32 = arith.mulf %17, %31 : vector<128x1xf32>
    %33 = math.tanh %32 : vector<128x1xf32>
    %34 = vector.broadcast %33 : vector<128x1xf32> to vector<128x128xf32>
    %35 = arith.mulf %34, %4 : vector<128x128xf32>
    %cst_16 = arith.constant 1.000000e-01 : f32
    %36 = vector.broadcast %cst_16 : f32 to vector<128x1xf32>
    %37 = arith.mulf %16, %36 : vector<128x1xf32>
    %38 = vector.broadcast %37 : vector<128x1xf32> to vector<128x128xf32>
    %39 = arith.divf %35, %38 : vector<128x128xf32>
    %40 = math.absf %4 : vector<128x128xf32>
    %cst_17 = arith.constant dense<0.000000e+00> : vector<128xf32>
    %41 = vector.multi_reduction <add>, %40, %cst_17 [1] : vector<128x128xf32> to vector<128xf32>
    %42 = vector.shape_cast %41 : vector<128xf32> to vector<128x1xf32>
    %cst_18 = arith.constant 0.000000e+00 : f32
    %43 = vector.broadcast %cst_18 : f32 to vector<128x1xf32>
    %44 = arith.cmpf ole, %42, %43 : vector<128x1xf32>
    %cst_19 = arith.constant 0.000000e+00 : f32
    %45 = vector.shape_cast %44 : vector<128x1xi1> to vector<128x1xi1>
    %46 = vector.broadcast %45 : vector<128x1xi1> to vector<128x128xi1>
    %47 = vector.broadcast %cst_19 : f32 to vector<128x128xf32>
    %48 = arith.select %46, %47, %39 : vector<128x128xi1>, vector<128x128xf32>
    %49 = arith.mulf %48, %48 : vector<128x128xf32>
    %cst_20 = arith.constant dense<0.000000e+00> : vector<128xf32>
    %50 = vector.multi_reduction <add>, %49, %cst_20 [1] : vector<128x128xf32> to vector<128xf32>
    %51 = vector.shape_cast %50 : vector<128xf32> to vector<128x1xf32>
    %52 = math.sqrt %51 : vector<128x1xf32>
    %cst_21 = arith.constant 1.000000e-15 : f32
    %53 = vector.broadcast %cst_21 : f32 to vector<128x1xf32>
    %54 = arith.maximumf %52, %53 : vector<128x1xf32>
    %cst_22 = arith.constant 9.98999977 : f32
    %55 = vector.broadcast %cst_22 : f32 to vector<128x1xf32>
    %56 = arith.cmpf ogt, %54, %55 : vector<128x1xf32>
    %57 = vector.broadcast %54 : vector<128x1xf32> to vector<128x128xf32>
    %58 = arith.divf %48, %57 : vector<128x128xf32>
    %cst_23 = arith.constant 9.98999977 : f32
    %59 = vector.broadcast %cst_23 : f32 to vector<128x128xf32>
    %60 = arith.mulf %58, %59 : vector<128x128xf32>
    %61 = vector.shape_cast %56 : vector<128x1xi1> to vector<128x1xi1>
    %62 = vector.broadcast %61 : vector<128x1xi1> to vector<128x128xi1>
    %63 = arith.select %62, %60, %48 : vector<128x128xi1>, vector<128x128xf32>
    %c0_24 = arith.constant 0 : index
    %c0_25 = arith.constant 0 : index
    %64 = vector.load %arg4[%c0_24, %c0_25] : memref<1x128xf32, #tpu.memory_space<vmem>>, vector<1x128xf32>
    %65 = vector.shape_cast %64 : vector<1x128xf32> to vector<1x128xf32>
    %66 = vector.broadcast %65 : vector<1x128xf32> to vector<128x128xf32>
    %67 = arith.mulf %63, %63 : vector<128x128xf32>
    %cst_26 = arith.constant dense<0.000000e+00> : vector<128xf32>
    %68 = vector.multi_reduction <add>, %67, %cst_26 [1] : vector<128x128xf32> to vector<128xf32>
    %69 = vector.shape_cast %68 : vector<128xf32> to vector<128x1xf32>
    %70 = arith.mulf %66, %66 : vector<128x128xf32>
    %cst_27 = arith.constant dense<0.000000e+00> : vector<128xf32>
    %71 = vector.multi_reduction <add>, %70, %cst_27 [1] : vector<128x128xf32> to vector<128xf32>
    %72 = vector.shape_cast %71 : vector<128xf32> to vector<128x1xf32>
    %73 = arith.mulf %63, %66 : vector<128x128xf32>
    %cst_28 = arith.constant dense<0.000000e+00> : vector<128xf32>
    %74 = vector.multi_reduction <add>, %73, %cst_28 [1] : vector<128x128xf32> to vector<128xf32>
    %75 = vector.shape_cast %74 : vector<128xf32> to vector<128x1xf32>
    %cst_29 = arith.constant 2.000000e-02 : f32
    %76 = vector.broadcast %cst_29 : f32 to vector<128x1xf32>
    %77 = arith.mulf %76, %75 : vector<128x1xf32>
    %cst_30 = arith.constant 1.000000e+00 : f32
    %78 = vector.broadcast %cst_30 : f32 to vector<128x1xf32>
    %79 = arith.addf %78, %77 : vector<128x1xf32>
    %cst_31 = arith.constant 0.00999999977 : f32
    %80 = vector.broadcast %cst_31 : f32 to vector<128x1xf32>
    %81 = arith.mulf %80, %72 : vector<128x1xf32>
    %82 = arith.addf %79, %81 : vector<128x1xf32>
    %83 = vector.broadcast %82 : vector<128x1xf32> to vector<128x128xf32>
    %84 = arith.mulf %83, %63 : vector<128x128xf32>
    %cst_32 = arith.constant 0.00999999977 : f32
    %85 = vector.broadcast %cst_32 : f32 to vector<128x1xf32>
    %86 = arith.mulf %85, %69 : vector<128x1xf32>
    %cst_33 = arith.constant 1.000000e+00 : f32
    %87 = vector.broadcast %cst_33 : f32 to vector<128x1xf32>
    %88 = arith.subf %87, %86 : vector<128x1xf32>
    %89 = vector.broadcast %88 : vector<128x1xf32> to vector<128x128xf32>
    %90 = arith.mulf %89, %66 : vector<128x128xf32>
    %91 = arith.addf %84, %90 : vector<128x128xf32>
    %cst_34 = arith.constant 2.000000e-02 : f32
    %92 = vector.broadcast %cst_34 : f32 to vector<128x1xf32>
    %93 = arith.mulf %92, %75 : vector<128x1xf32>
    %cst_35 = arith.constant 1.000000e+00 : f32
    %94 = vector.broadcast %cst_35 : f32 to vector<128x1xf32>
    %95 = arith.addf %94, %93 : vector<128x1xf32>
    %cst_36 = arith.constant 9.99999974E-5 : f32
    %96 = vector.broadcast %cst_36 : f32 to vector<128x1xf32>
    %97 = arith.mulf %96, %69 : vector<128x1xf32>
    %98 = arith.mulf %97, %72 : vector<128x1xf32>
    %99 = arith.addf %95, %98 : vector<128x1xf32>
    %cst_37 = arith.constant 1.000000e-15 : f32
    %100 = vector.broadcast %cst_37 : f32 to vector<128x1xf32>
    %101 = arith.maximumf %99, %100 : vector<128x1xf32>
    %102 = vector.broadcast %101 : vector<128x1xf32> to vector<128x128xf32>
    %103 = arith.divf %91, %102 : vector<128x128xf32>
    %104 = arith.mulf %103, %103 : vector<128x128xf32>
    %cst_38 = arith.constant dense<0.000000e+00> : vector<128xf32>
    %105 = vector.multi_reduction <add>, %104, %cst_38 [1] : vector<128x128xf32> to vector<128xf32>
    %106 = vector.shape_cast %105 : vector<128xf32> to vector<128x1xf32>
    %107 = math.sqrt %106 : vector<128x1xf32>
    %cst_39 = arith.constant 1.000000e-15 : f32
    %108 = vector.broadcast %cst_39 : f32 to vector<128x1xf32>
    %109 = arith.maximumf %107, %108 : vector<128x1xf32>
    %cst_40 = arith.constant 9.98999977 : f32
    %110 = vector.broadcast %cst_40 : f32 to vector<128x1xf32>
    %111 = arith.cmpf ogt, %109, %110 : vector<128x1xf32>
    %112 = vector.broadcast %109 : vector<128x1xf32> to vector<128x128xf32>
    %113 = arith.divf %103, %112 : vector<128x128xf32>
    %cst_41 = arith.constant 9.98999977 : f32
    %114 = vector.broadcast %cst_41 : f32 to vector<128x128xf32>
    %115 = arith.mulf %113, %114 : vector<128x128xf32>
    %116 = vector.shape_cast %111 : vector<128x1xi1> to vector<128x1xi1>
    %117 = vector.broadcast %116 : vector<128x1xi1> to vector<128x128xi1>
    %118 = arith.select %117, %115, %103 : vector<128x128xi1>, vector<128x128xf32>
    %c0_42 = arith.constant 0 : index
    %c0_43 = arith.constant 0 : index
    %119 = vector.load %arg5[%c0_42, %c0_43] : memref<128x128xf32, #tpu.memory_space<vmem>>, vector<128x128xf32>
    tpu.vector_store %arg5[%c0_42, %c0_43], %118 {strides = array<i32>} : memref<128x128xf32, #tpu.memory_space<vmem>>, vector<128x128xf32>,
    return
  }
  func.func @transform_0(%arg0: i32) -> (i32, i32) {
    %c0_i32 = arith.constant 0 : i32
    %c0_i32_0 = arith.constant 0 : i32
    return %arg0, %c0_i32 : i32, i32
  }
  func.func @transform_1(%arg0: i32) -> (i32, i32) {
    %c0_i32 = arith.constant 0 : i32
    %c0_i32_0 = arith.constant 0 : i32
    %c0_i32_1 = arith.constant 0 : i32
    return %c0_i32, %c0_i32_0 : i32, i32
  }
  func.func @transform_2(%arg0: i32) -> (i32, i32) {
    %c0_i32 = arith.constant 0 : i32
    %c0_i32_0 = arith.constant 0 : i32
    %c0_i32_1 = arith.constant 0 : i32
    return %c0_i32, %c0_i32_0 : i32, i32
  }
  func.func @transform_3(%arg0: i32) -> (i32, i32) {
    %c0_i32 = arith.constant 0 : i32
    %c0_i32_0 = arith.constant 0 : i32
    %c0_i32_1 = arith.constant 0 : i32
    return %c0_i32, %c0_i32_0 : i32, i32
  }
  func.func @transform_4(%arg0: i32) -> (i32, i32) {
    %c0_i32 = arith.constant 0 : i32
    %c0_i32_0 = arith.constant 0 : i32
    return %arg0, %c0_i32 : i32, i32
  }
}

</mosaic_0001>

<llo_original>
// kernel: tpu_custom_call.1
$region0: #{tpu_custom_call.1}
  #allocation0 [shape = 'u32[]', space=smem, size = 0x4, offset = 0x4, fixed_abs, tag = 'smem constant byte address 0x4 - core index']
  #allocation1 [shape = 'u32[144,128]{1,0:T(1,128)}', space=vmem, size = 0x12000, scoped, tag = 'internal scratch']
  %s0 = inlined_call_operand.hbm [shape: f32[384,128], index: 0, kind: input, shape index: {}]
  %s1 = inlined_call_operand.hbm [shape: f32[128,128], index: 1, kind: input, shape index: {}]
  %s2 = inlined_call_operand.hbm [shape: f32[128,128], index: 2, kind: input, shape index: {}]
  %s3 = inlined_call_operand.vmem [shape: f32[1,128], index: 3, kind: input, shape index: {}]
  %s4 = inlined_call_operand.hbm [shape: f32[384,128], index: 4, kind: output, shape index: {}]
  %s5 = sld [smem:[#allocation0]]
  $region61: #{tpu_custom_call.1} parent=0
    _
  %s7 = ssub.s32 1, %s5
  %s8 = scalar_select 0, %s7, %s5
  $region1: #{tpu_custom_call.1} parent=0
    #allocation2 [shape = 'u8[131072]{0}', space=vmem, size = 0x20000, scoped, tag = 'input window, operand 0']
    #allocation3 [shape = 's32[2]{0}', space=sflag, size = 0x8, scoped, tag = 'scoped memory for tpu_custom_call.1']
    #allocation4 [shape = 's32[2]{0}', space=sflag, size = 0x8, scoped, tag = 'scoped memory for tpu_custom_call.1']
    #allocation5 [shape = 'u8[65536]{0}', space=vmem, size = 0x10000, scoped, tag = 'input window, operand 1, single buffered']
    #allocation6 [shape = 's32[1]{0}', space=sflag, size = 0x4, scoped, tag = 'scoped memory for tpu_custom_call.1']
    #allocation7 [shape = 'u8[65536]{0}', space=vmem, size = 0x10000, scoped, tag = 'input window, operand 2, single buffered']
    #allocation8 [shape = 'u8[131072]{0}', space=vmem, size = 0x20000, scoped, tag = 'output window, operand 0']
    %9 = vsyncpa [#allocation3], 0
    %s10 = scalar_lea.sflag [#allocation3], 1
    %11 = vsyncpa %s10, 0
    %12 = vsyncpa [#allocation6], 0
    %13 = vsyncpa [#allocation4], 0
    %s14 = scalar_lea.sflag [#allocation4], 1
    %15 = vsyncpa %s14, 0
    loop: start=0, step=1, limit=5
    $region2: #{tpu_custom_call.1} parent=1 // loop_pre_header
      _
    $region3: #{tpu_custom_call.1} parent=1 // loop_header
      %s17 = sphi 0, %s21
      %p18 = scmp.ge.s32.totalorder %s17, 5
      %s27 = sphi 0, %s29
      %s30 = sphi 0, %s27
      %s31 = sphi 0, %s30
      %s47 = sphi 0, %s31
      %s51 = sphi 0, %s51
      %s53 = sphi 0, %s51
      %s54 = sphi 0, %s53
      %s68 = sphi 0, %s54
      %s72 = sphi 0, %s72
      %s74 = sphi 0, %s72
      %s75 = sphi 0, %s74
      %s89 = sphi 0, %s75
      %s93 = sphi 0, %s93
      %s95 = sphi 0, %s93
      %s96 = sphi 0, %s95
      %s110 = sphi 0, %s96
      %s116 = sphi 0, %s118
      %s119 = sphi 0, %s116
      %s120 = sphi 0, %s119
      %s136 = sphi 0, %s120
    $region4: #{tpu_custom_call.1} parent=1 // loop_header_branch
      %20 = sbr.rel (%p18) target = $region8
    $region5: #{tpu_custom_call.1} parent=1 // loop_body
      %s22 = ssub.s32 %s17, 1
      %s23 = ssub.s32 %s17, 2
      %s24 = sadd.s32 %s17, 1
      %s25 = ssub.s32 %s17, %s24
      %p26 = scmp.eq.s32.totalorder %s25, 0
      %s28 = sadd.s32 %s27, 1
      %s29 = scalar_select %p26, %s27, %s28
      %p32 = pneg %p26
      %p33 = scmp.eq.s32.totalorder %s17, 2
      %p34 = por %p32, %p33
      %p35 = scmp.ne.s32.totalorder %s27, %s30
      %p36 = scmp.eq.s32.totalorder %s17, 0
      %p37 = por %p35, %p36
      %p38 = scmp.ne.s32.totalorder %s27, %s30
      %p39 = scmp.eq.s32.totalorder %s22, 2
      %p40 = por %p38, %p39
      %p41 = scmp.ne.s32.totalorder %s30, %s31
      %p42 = scmp.eq.s32.totalorder %s22, 0
      %p43 = por %p41, %p42
      %p44 = scmp.ne.s32.totalorder %s30, %s31
      %p45 = scmp.eq.s32.totalorder %s23, 2
      %p46 = por %p44, %p45
      %p48 = scmp.ne.s32.totalorder %s31, %s47
      %p49 = scmp.eq.s32.totalorder %s23, 0
      %p50 = por %p48, %p49
      %s52 = sadd.s32 %s51, 1
      %p55 = scmp.eq.s32.totalorder %s17, 2
      %p56 = scmp.ne.s32.totalorder %s51, %s53
      %p57 = scmp.eq.s32.totalorder %s17, 0
      %p58 = por %p56, %p57
      %p59 = scmp.ne.s32.totalorder %s51, %s53
      %p60 = scmp.eq.s32.totalorder %s22, 2
      %p61 = por %p59, %p60
      %p62 = scmp.ne.s32.totalorder %s53, %s54
      %p63 = scmp.eq.s32.totalorder %s22, 0
      %p64 = por %p62, %p63
      %p65 = scmp.ne.s32.totalorder %s53, %s54
      %p66 = scmp.eq.s32.totalorder %s23, 2
      %p67 = por %p65, %p66
      %p69 = scmp.ne.s32.totalorder %s54, %s68
      %p70 = scmp.eq.s32.totalorder %s23, 0
      %p71 = por %p69, %p70
      %s73 = sadd.s32 %s72, 1
      %p76 = scmp.eq.s32.totalorder %s17, 2
      %p77 = scmp.ne.s32.totalorder %s72, %s74
      %p78 = scmp.eq.s32.totalorder %s17, 0
      %p79 = por %p77, %p78
      %p80 = scmp.ne.s32.totalorder %s72, %s74
      %p81 = scmp.eq.s32.totalorder %s22, 2
      %p82 = por %p80, %p81
      %p83 = scmp.ne.s32.totalorder %s74, %s75
      %p84 = scmp.eq.s32.totalorder %s22, 0
      %p85 = por %p83, %p84
      %p86 = scmp.ne.s32.totalorder %s74, %s75
      %p87 = scmp.eq.s32.totalorder %s23, 2
      %p88 = por %p86, %p87
      %p90 = scmp.ne.s32.totalorder %s75, %s89
      %p91 = scmp.eq.s32.totalorder %s23, 0
      %p92 = por %p90, %p91
      %s94 = sadd.s32 %s93, 1
      %p97 = scmp.eq.s32.totalorder %s17, 2
      %p98 = scmp.ne.s32.totalorder %s93, %s95
      %p99 = scmp.eq.s32.totalorder %s17, 0
      %p100 = por %p98, %p99
      %p101 = scmp.ne.s32.totalorder %s93, %s95
      %p102 = scmp.eq.s32.totalorder %s22, 2
      %p103 = por %p101, %p102
      %p104 = scmp.ne.s32.totalorder %s95, %s96
      %p105 = scmp.eq.s32.totalorder %s22, 0
      %p106 = por %p104, %p105
      %p107 = scmp.ne.s32.totalorder %s95, %s96
      %p108 = scmp.eq.s32.totalorder %s23, 2
      %p109 = por %p107, %p108
      %p111 = scmp.ne.s32.totalorder %s96, %s110
      %p112 = scmp.eq.s32.totalorder %s23, 0
      %p113 = por %p111, %p112
      %s114 = ssub.s32 %s17, %s24
      %p115 = scmp.eq.s32.totalorder %s114, 0
      %s117 = sadd.s32 %s116, 1
      %s118 = scalar_select %p115, %s116, %s117
      %p121 = pneg %p115
      %p122 = scmp.eq.s32.totalorder %s17, 2
      %p123 = por %p121, %p122
      %p124 = scmp.ne.s32.totalorder %s116, %s119
      %p125 = scmp.eq.s32.totalorder %s17, 0
      %p126 = por %p124, %p125
      %p127 = scmp.ne.s32.totalorder %s116, %s119
      %p128 = scmp.eq.s32.totalorder %s22, 2
      %p129 = por %p127, %p128
      %p130 = scmp.ne.s32.totalorder %s119, %s120
      %p131 = scmp.eq.s32.totalorder %s22, 0
      %p132 = por %p130, %p131
      %p133 = scmp.ne.s32.totalorder %s119, %s120
      %p134 = scmp.eq.s32.totalorder %s23, 2
      %p135 = por %p133, %p134
      %p137 = scmp.ne.s32.totalorder %s120, %s136
      %p138 = scmp.eq.s32.totalorder %s23, 0
      %p139 = por %p137, %p138
      %p140 = scmp.le.s32.totalorder 1, %s17
      %p141 = scmp.lt.s32.totalorder %s17, 4
      %p142 = pnand %p140, %p141
      %p143 = pneg %p142
      // Predicated region
      $region9: #{tpu_custom_call.1} parent=5 // pred_check
        _
      $region10: #{tpu_custom_call.1} parent=5 // pred_check_branch
        %145 = sbr.rel (%p142) target = $region12
      $region11: #{tpu_custom_call.1} parent=5 // pred_region
        %s146 = ssub.s32 %s17, 1
        // Predicated region
        $region13: #{tpu_custom_call.1} parent=11 // pred_check
          %p147 = pneg %p64
        $region14: #{tpu_custom_call.1} parent=11 // pred_check_branch
          %149 = sbr.rel (%p147) target = $region16
        $region15: #{tpu_custom_call.1} parent=11 // pred_region
          %s151 = ssub.s32 2048, 2048
          %152 = vsyncadd [#allocation6], %s151
          %s153 = sshll.u32 [#allocation5], 4
          %s154 = int_to_ptr.vmem [resolvable:$true] %s153
          %159 = dma.hbm_to_vmem [thread:$0]  %s1, 2048, %s154, [#allocation6], 128, 128, 8
        $region16: #{tpu_custom_call.1} parent=11 // pred_fallthru
          _
        // Predicated region
        $region17: #{tpu_custom_call.1} parent=11 // pred_check
          %p160 = pneg %p85
        $region18: #{tpu_custom_call.1} parent=11 // pred_check_branch
          %162 = sbr.rel (%p160) target = $region20
        $region19: #{tpu_custom_call.1} parent=11 // pred_region
          %s164 = ssub.s32 2048, 2048
          %165 = vsyncadd [#allocation6], %s164
          %s166 = sshll.u32 [#allocation7], 4
          %s167 = int_to_ptr.vmem [resolvable:$true] %s166
          %172 = dma.hbm_to_vmem [thread:$0]  %s2, 2048, %s167, [#allocation6], 128, 128, 8
        $region20: #{tpu_custom_call.1} parent=11 // pred_fallthru
          _
        // Predicated region
        $region21: #{tpu_custom_call.1} parent=11 // pred_check
          %p173 = pneg %p106
        $region22: #{tpu_custom_call.1} parent=11 // pred_check_branch
          %175 = sbr.rel (%p173) target = $region24
        $region23: #{tpu_custom_call.1} parent=11 // pred_region
          _
        $region24: #{tpu_custom_call.1} parent=11 // pred_fallthru
          _
      $region12: #{tpu_custom_call.1} parent=5 // pred_fallthru
        _
      %p176 = scmp.lt.s32.totalorder %s17, 3
      // Predicated region
      $region25: #{tpu_custom_call.1} parent=5 // pred_check
        %p177 = pneg %p176
      $region26: #{tpu_custom_call.1} parent=5 // pred_check_branch
        %179 = sbr.rel (%p177) target = $region28
      $region27: #{tpu_custom_call.1} parent=5 // pred_region
        // Predicated region
        $region29: #{tpu_custom_call.1} parent=27 // pred_check
          %p180 = pneg %p37
        $region30: #{tpu_custom_call.1} parent=27 // pred_check_branch
          %182 = sbr.rel (%p180) target = $region32
        $region31: #{tpu_custom_call.1} parent=27 // pred_region
          %s183 = sand.u32 %s27, 1
          %s184 = scalar_lea.sflag [#allocation3], %s183
          %s185 = sand.u32 %s27, 1
          %s186 = smul.addr %s185, 128
          %s187 = scalar_lea.vmem [#allocation2], %s186
          %s188 = smul.u32 16, %s17
          %s190 = ssub.s32 2048, 2048
          %191 = vsyncadd %s184, %s190
          %s192 = smul.addr %s188, 128
          %s193 = scalar_lea.hbm %s0, %s192
          %s194 = sshll.u32 %s187, 4
          %s195 = int_to_ptr.vmem [resolvable:$true] %s194
          %200 = dma.hbm_to_vmem [thread:$0]  %s193, 2048, %s195, %s184, 128, 128, 8
        $region32: #{tpu_custom_call.1} parent=27 // pred_fallthru
          _
      $region28: #{tpu_custom_call.1} parent=5 // pred_fallthru
        _
      %p201 = scmp.le.s32.totalorder 1, %s17
      %p202 = scmp.lt.s32.totalorder %s17, 4
      %p203 = pnand %p201, %p202
      %p204 = pneg %p203
      // Predicated region
      $region33: #{tpu_custom_call.1} parent=5 // pred_check
        _
      $region34: #{tpu_custom_call.1} parent=5 // pred_check_branch
        %206 = sbr.rel (%p203) target = $region36
      $region35: #{tpu_custom_call.1} parent=5 // pred_region
        %s207 = ssub.s32 %s17, 1
        %s208 = sand.u32 %s30, 1
        %s209 = scalar_lea.sflag [#allocation3], %s208
        %s210 = sand.u32 %s30, 1
        %s211 = smul.addr %s210, 128
        %s212 = scalar_lea.vmem [#allocation2], %s211
        // Predicated region
        $region37: #{tpu_custom_call.1} parent=35 // pred_check
          %p213 = pneg %p43
        $region38: #{tpu_custom_call.1} parent=35 // pred_check_branch
          %215 = sbr.rel (%p213) target = $region40
        $region39: #{tpu_custom_call.1} parent=35 // pred_region
          %216 = dma.done %s209, 2048
        $region40: #{tpu_custom_call.1} parent=35 // pred_fallthru
          _
        // Predicated region
        $region41: #{tpu_custom_call.1} parent=35 // pred_check
          %p217 = pneg %p64
        $region42: #{tpu_custom_call.1} parent=35 // pred_check_branch
          %219 = sbr.rel (%p217) target = $region44
        $region43: #{tpu_custom_call.1} parent=35 // pred_region
          %220 = dma.done [#allocation6], 2048
        $region44: #{tpu_custom_call.1} parent=35 // pred_fallthru
          _
        // Predicated region
        $region45: #{tpu_custom_call.1} parent=35 // pred_check
          %p221 = pneg %p85
        $region46: #{tpu_custom_call.1} parent=35 // pred_check_branch
          %223 = sbr.rel (%p221) target = $region48
        $region47: #{tpu_custom_call.1} parent=35 // pred_region
          %224 = dma.done [#allocation6], 2048
        $region48: #{tpu_custom_call.1} parent=35 // pred_fallthru
          _
        %s225 = sand.u32 %s30, 1
        %s226 = scalar_lea.sflag [#allocation3], %s225
        %s227 = sand.u32 %s30, 1
        %s228 = smul.addr %s227, 128
        %s229 = scalar_lea.vmem [#allocation2], %s228
        %p230 = pneg %p43
        %p231 = pneg %p40
        %p232 = pneg %p64
        %p233 = pneg %p61
        %p234 = pneg %p85
        %p235 = pneg %p82
        %p236 = pneg %p106
        %p237 = pneg %p103
        %p238 = pneg %p132
        %p239 = pneg %p129
        %s240 = sand.u32 %s119, 1
        %s241 = scalar_lea.sflag [#allocation4], %s240
        %s242 = sand.u32 %s119, 1
        %s243 = smul.addr %s242, 128
        %s244 = scalar_lea.vmem [#allocation8], %s243
        %s245 = smul.u32 16, %s22
        %s246 = smul.u32 16, %s22
        %v247 = vld [vmem:[%s212] sm:$0xff]
        %v248 = vld [vmem:[%s212 + $0x8] sm:$0xff]
        %v249 = vld [vmem:[%s212 + $0x10] sm:$0xff]
        %v250 = vld [vmem:[%s212 + $0x18] sm:$0xff]
        %v251 = vld [vmem:[%s212 + $0x20] sm:$0xff]
        %v252 = vld [vmem:[%s212 + $0x28] sm:$0xff]
        %v253 = vld [vmem:[%s212 + $0x30] sm:$0xff]
        %v254 = vld [vmem:[%s212 + $0x38] sm:$0xff]
        %v255 = vld [vmem:[%s212 + $0x40] sm:$0xff]
        %v256 = vld [vmem:[%s212 + $0x48] sm:$0xff]
        %v257 = vld [vmem:[%s212 + $0x50] sm:$0xff]
        %v258 = vld [vmem:[%s212 + $0x58] sm:$0xff]
        %v259 = vld [vmem:[%s212 + $0x60] sm:$0xff]
        %v260 = vld [vmem:[%s212 + $0x68] sm:$0xff]
        %v261 = vld [vmem:[%s212 + $0x70] sm:$0xff]
        %v262 = vld [vmem:[%s212 + $0x78] sm:$0xff]
        %v263 = vld [vmem:[#allocation5] sm:$0xff]
        %v264 = vld [vmem:[#allocation5 + $0x8] sm:$0xff]
        %v265 = vld [vmem:[#allocation5 + $0x10] sm:$0xff]
        %v266 = vld [vmem:[#allocation5 + $0x18] sm:$0xff]
        %v267 = vld [vmem:[#allocation5 + $0x20] sm:$0xff]
        %v268 = vld [vmem:[#allocation5 + $0x28] sm:$0xff]
        %v269 = vld [vmem:[#allocation5 + $0x30] sm:$0xff]
        %v270 = vld [vmem:[#allocation5 + $0x38] sm:$0xff]
        %v271 = vld [vmem:[#allocation5 + $0x40] sm:$0xff]
        %v272 = vld [vmem:[#allocation5 + $0x48] sm:$0xff]
        %v273 = vld [vmem:[#allocation5 + $0x50] sm:$0xff]
        %v274 = vld [vmem:[#allocation5 + $0x58] sm:$0xff]
        %v275 = vld [vmem:[#allocation5 + $0x60] sm:$0xff]
        %v276 = vld [vmem:[#allocation5 + $0x68] sm:$0xff]
        %v277 = vld [vmem:[#allocation5 + $0x70] sm:$0xff]
        %v278 = vld [vmem:[#allocation5 + $0x78] sm:$0xff]
        %279 = vmatprep.subr.mxu0 0.0
        %280 = vmatpush1.msra.mxu0 %v278
        %281 = vmatprep.subr.mxu0 0.0
        %282 = vmatpush1.msra.mxu0 %v277
        %283 = vmatprep.subr.mxu0 0.0
        %284 = vmatpush1.msra.mxu0 %v276
        %285 = vmatprep.subr.mxu0 0.0
        %286 = vmatpush1.msra.mxu0 %v275
        %287 = vmatprep.subr.mxu0 0.0
        %288 = vmatpush1.msra.mxu0 %v274
        %289 = vmatprep.subr.mxu0 0.0
        %290 = vmatpush1.msra.mxu0 %v273
        %291 = vmatprep.subr.mxu0 0.0
        %292 = vmatpush1.msra.mxu0 %v272
        %293 = vmatprep.subr.mxu0 0.0
        %294 = vmatpush1.msra.mxu0 %v271
        %295 = vmatprep.subr.mxu0 0.0
        %296 = vmatpush1.msra.mxu0 %v270
        %297 = vmatprep.subr.mxu0 0.0
        %298 = vmatpush1.msra.mxu0 %v269
        %299 = vmatprep.subr.mxu0 0.0
        %300 = vmatpush1.msra.mxu0 %v268
        %301 = vmatprep.subr.mxu0 0.0
        %302 = vmatpush1.msra.mxu0 %v267
        %303 = vmatprep.subr.mxu0 0.0
        %304 = vmatpush1.msra.mxu0 %v266
        %305 = vmatprep.subr.mxu0 0.0
        %306 = vmatpush1.msra.mxu0 %v265
        %307 = vmatprep.subr.mxu0 0.0
        %308 = vmatpush1.msra.mxu0 %v264
        %309 = vmatprep.subr.mxu0 0.0
        %310 = vmatpush1.msra.mxu0 %v263
        %311 = vmatprep.subr.mxu0 0.0
        %312 = vmatpush2.msra.mxu0 0.0
        %313 = vmatprep.subr.mxu0 0.0
        %314 = vmatpush2.msra.mxu0 0.0
        %315 = vmatprep.subr.mxu0 0.0
        %316 = vmatpush2.msra.mxu0 0.0
        %317 = vmatprep.subr.mxu0 0.0
        %318 = vmatpush2.msra.mxu0 0.0
        %319 = vmatprep.subr.mxu0 0.0
        %320 = vmatpush2.msra.mxu0 0.0
        %321 = vmatprep.subr.mxu0 0.0
        %322 = vmatpush2.msra.mxu0 0.0
        %323 = vmatprep.subr.mxu0 0.0
        %324 = vmatpush2.msra.mxu0 0.0
        %325 = vmatprep.subr.mxu0 0.0
        %326 = vmatpush2.msra.mxu0 0.0
        %327 = vmatprep.subr.mxu0 0.0
        %328 = vmatpush2.msra.mxu0 0.0
        %329 = vmatprep.subr.mxu0 0.0
        %330 = vmatpush2.msra.mxu0 0.0
        %331 = vmatprep.subr.mxu0 0.0
        %332 = vmatpush2.msra.mxu0 0.0
        %333 = vmatprep.subr.mxu0 0.0
        %334 = vmatpush2.msra.mxu0 0.0
        %335 = vmatprep.subr.mxu0 0.0
        %336 = vmatpush2.msra.mxu0 0.0
        %337 = vmatprep.subr.mxu0 0.0
        %338 = vmatpush2.msra.mxu0 0.0
        %339 = vmatprep.subr.mxu0 0.0
        %340 = vmatpush2.msra.mxu0 0.0
        %341 = vmatprep.subr.mxu0 0.0
        %342 = vmatpush2.msra.mxu0 0.0
        %343 = vmatprep.mubr.f32.mxu0 0.0
        %344 = vmatmul.mubr.f32.gmra.mxu0 %v247
        %v345 = vpop.f32.mrf.mxu0
        %v346 = vadd.f32 0.0, %v345
        %v347 = vpop.f32.mrf.mxu0
        %348 = vmatprep.mubr.f32.mxu0 0.0
        %349 = vmatmul.mubr.f32.gmra.mxu0 %v248
        %v350 = vpop.f32.mrf.mxu0
        %v351 = vadd.f32 0.0, %v350
        %v352 = vpop.f32.mrf.mxu0
        %353 = vmatprep.mubr.f32.mxu0 0.0
        %354 = vmatmul.mubr.f32.gmra.mxu0 %v249
        %v355 = vpop.f32.mrf.mxu0
        %v356 = vadd.f32 0.0, %v355
        %v357 = vpop.f32.mrf.mxu0
        %358 = vmatprep.mubr.f32.mxu0 0.0
        %359 = vmatmul.mubr.f32.gmra.mxu0 %v250
        %v360 = vpop.f32.mrf.mxu0
        %v361 = vadd.f32 0.0, %v360
        %v362 = vpop.f32.mrf.mxu0
        %363 = vmatprep.mubr.f32.mxu0 0.0
        %364 = vmatmul.mubr.f32.gmra.mxu0 %v251
        %v365 = vpop.f32.mrf.mxu0
        %v366 = vadd.f32 0.0, %v365
        %v367 = vpop.f32.mrf.mxu0
        %368 = vmatprep.mubr.f32.mxu0 0.0
        %369 = vmatmul.mubr.f32.gmra.mxu0 %v252
        %v370 = vpop.f32.mrf.mxu0
        %v371 = vadd.f32 0.0, %v370
        %v372 = vpop.f32.mrf.mxu0
        %373 = vmatprep.mubr.f32.mxu0 0.0
        %374 = vmatmul.mubr.f32.gmra.mxu0 %v253
        %v375 = vpop.f32.mrf.mxu0
        %v376 = vadd.f32 0.0, %v375
        %v377 = vpop.f32.mrf.mxu0
        %378 = vmatprep.mubr.f32.mxu0 0.0
        %379 = vmatmul.mubr.f32.gmra.mxu0 %v254
        %v380 = vpop.f32.mrf.mxu0
        %v381 = vadd.f32 0.0, %v380
        %v382 = vpop.f32.mrf.mxu0
        %383 = vmatprep.mubr.f32.mxu0 0.0
        %384 = vmatmul.mubr.f32.gmra.mxu0 %v255
        %v385 = vpop.f32.mrf.mxu0
        %v386 = vadd.f32 0.0, %v385
        %v387 = vpop.f32.mrf.mxu0
        %388 = vmatprep.mubr.f32.mxu0 0.0
        %389 = vmatmul.mubr.f32.gmra.mxu0 %v256
        %v390 = vpop.f32.mrf.mxu0
        %v391 = vadd.f32 0.0, %v390
        %v392 = vpop.f32.mrf.mxu0
        %393 = vmatprep.mubr.f32.mxu0 0.0
        %394 = vmatmul.mubr.f32.gmra.mxu0 %v257
        %v395 = vpop.f32.mrf.mxu0
        %v396 = vadd.f32 0.0, %v395
        %v397 = vpop.f32.mrf.mxu0
        %398 = vmatprep.mubr.f32.mxu0 0.0
        %399 = vmatmul.mubr.f32.gmra.mxu0 %v258
        %v400 = vpop.f32.mrf.mxu0
        %v401 = vadd.f32 0.0, %v400
        %v402 = vpop.f32.mrf.mxu0
        %403 = vmatprep.mubr.f32.mxu0 0.0
        %404 = vmatmul.mubr.f32.gmra.mxu0 %v259
        %v405 = vpop.f32.mrf.mxu0
        %v406 = vadd.f32 0.0, %v405
        %v407 = vpop.f32.mrf.mxu0
        %408 = vmatprep.mubr.f32.mxu0 0.0
        %409 = vmatmul.mubr.f32.gmra.mxu0 %v260
        %v410 = vpop.f32.mrf.mxu0
        %v411 = vadd.f32 0.0, %v410
        %v412 = vpop.f32.mrf.mxu0
        %413 = vmatprep.mubr.f32.mxu0 0.0
        %414 = vmatmul.mubr.f32.gmra.mxu0 %v261
        %v415 = vpop.f32.mrf.mxu0
        %v416 = vadd.f32 0.0, %v415
        %v417 = vpop.f32.mrf.mxu0
        %418 = vmatprep.mubr.f32.mxu0 0.0
        %419 = vmatmul.mubr.f32.gmra.mxu0 %v262
        %v420 = vpop.f32.mrf.mxu0
        %v421 = vadd.f32 0.0, %v420
        %v422 = vpop.f32.mrf.mxu0
        %423 = vdwg.mxu0
        %v424 = vld [vmem:[#allocation7] sm:$0xff]
        %v425 = vld [vmem:[#allocation7 + $0x8] sm:$0xff]
        %v426 = vld [vmem:[#allocation7 + $0x10] sm:$0xff]
        %v427 = vld [vmem:[#allocation7 + $0x18] sm:$0xff]
        %v428 = vld [vmem:[#allocation7 + $0x20] sm:$0xff]
        %v429 = vld [vmem:[#allocation7 + $0x28] sm:$0xff]
        %v430 = vld [vmem:[#allocation7 + $0x30] sm:$0xff]
        %v431 = vld [vmem:[#allocation7 + $0x38] sm:$0xff]
        %v432 = vld [vmem:[#allocation7 + $0x40] sm:$0xff]
        %v433 = vld [vmem:[#allocation7 + $0x48] sm:$0xff]
        %v434 = vld [vmem:[#allocation7 + $0x50] sm:$0xff]
        %v435 = vld [vmem:[#allocation7 + $0x58] sm:$0xff]
        %v436 = vld [vmem:[#allocation7 + $0x60] sm:$0xff]
        %v437 = vld [vmem:[#allocation7 + $0x68] sm:$0xff]
        %v438 = vld [vmem:[#allocation7 + $0x70] sm:$0xff]
        %v439 = vld [vmem:[#allocation7 + $0x78] sm:$0xff]
        %440 = vmatprep.subr.mxu0 0.0
        %441 = vmatpush1.msra.mxu0 %v439
        %442 = vmatprep.subr.mxu0 0.0
        %443 = vmatpush1.msra.mxu0 %v438
        %444 = vmatprep.subr.mxu0 0.0
        %445 = vmatpush1.msra.mxu0 %v437
        %446 = vmatprep.subr.mxu0 0.0
        %447 = vmatpush1.msra.mxu0 %v436
        %448 = vmatprep.subr.mxu0 0.0
        %449 = vmatpush1.msra.mxu0 %v435
        %450 = vmatprep.subr.mxu0 0.0
        %451 = vmatpush1.msra.mxu0 %v434
        %452 = vmatprep.subr.mxu0 0.0
        %453 = vmatpush1.msra.mxu0 %v433
        %454 = vmatprep.subr.mxu0 0.0
        %455 = vmatpush1.msra.mxu0 %v432
        %456 = vmatprep.subr.mxu0 0.0
        %457 = vmatpush1.msra.mxu0 %v431
        %458 = vmatprep.subr.mxu0 0.0
        %459 = vmatpush1.msra.mxu0 %v430
        %460 = vmatprep.subr.mxu0 0.0
        %461 = vmatpush1.msra.mxu0 %v429
        %462 = vmatprep.subr.mxu0 0.0
        %463 = vmatpush1.msra.mxu0 %v428
        %464 = vmatprep.subr.mxu0 0.0
        %465 = vmatpush1.msra.mxu0 %v427
        %466 = vmatprep.subr.mxu0 0.0
        %467 = vmatpush1.msra.mxu0 %v426
        %468 = vmatprep.subr.mxu0 0.0
        %469 = vmatpush1.msra.mxu0 %v425
        %470 = vmatprep.subr.mxu0 0.0
        %471 = vmatpush1.msra.mxu0 %v424
        %472 = vmatprep.subr.mxu0 0.0
        %473 = vmatpush2.msra.mxu0 0.0
        %474 = vmatprep.subr.mxu0 0.0
        %475 = vmatpush2.msra.mxu0 0.0
        %476 = vmatprep.subr.mxu0 0.0
        %477 = vmatpush2.msra.mxu0 0.0
        %478 = vmatprep.subr.mxu0 0.0
        %479 = vmatpush2.msra.mxu0 0.0
        %480 = vmatprep.subr.mxu0 0.0
        %481 = vmatpush2.msra.mxu0 0.0
        %482 = vmatprep.subr.mxu0 0.0
        %483 = vmatpush2.msra.mxu0 0.0
        %484 = vmatprep.subr.mxu0 0.0
        %485 = vmatpush2.msra.mxu0 0.0
        %486 = vmatprep.subr.mxu0 0.0
        %487 = vmatpush2.msra.mxu0 0.0
        %488 = vmatprep.subr.mxu0 0.0
        %489 = vmatpush2.msra.mxu0 0.0
        %490 = vmatprep.subr.mxu0 0.0
        %491 = vmatpush2.msra.mxu0 0.0
        %492 = vmatprep.subr.mxu0 0.0
        %493 = vmatpush2.msra.mxu0 0.0
        %494 = vmatprep.subr.mxu0 0.0
        %495 = vmatpush2.msra.mxu0 0.0
        %496 = vmatprep.subr.mxu0 0.0
        %497 = vmatpush2.msra.mxu0 0.0
        %498 = vmatprep.subr.mxu0 0.0
        %499 = vmatpush2.msra.mxu0 0.0
        %500 = vmatprep.subr.mxu0 0.0
        %501 = vmatpush2.msra.mxu0 0.0
        %502 = vmatprep.subr.mxu0 0.0
        %503 = vmatpush2.msra.mxu0 0.0
        %504 = vmatprep.mubr.f32.mxu0 0.0
        %505 = vmatmul.mubr.f32.gmra.mxu0 %v346
        %v506 = vpop.f32.mrf.mxu0
        %v507 = vadd.f32 0.0, %v506
        %v508 = vpop.f32.mrf.mxu0
        %509 = vmatprep.mubr.f32.mxu0 0.0
        %510 = vmatmul.mubr.f32.gmra.mxu0 %v351
        %v511 = vpop.f32.mrf.mxu0
        %v512 = vadd.f32 0.0, %v511
        %v513 = vpop.f32.mrf.mxu0
        %514 = vmatprep.mubr.f32.mxu0 0.0
        %515 = vmatmul.mubr.f32.gmra.mxu0 %v356
        %v516 = vpop.f32.mrf.mxu0
        %v517 = vadd.f32 0.0, %v516
        %v518 = vpop.f32.mrf.mxu0
        %519 = vmatprep.mubr.f32.mxu0 0.0
        %520 = vmatmul.mubr.f32.gmra.mxu0 %v361
        %v521 = vpop.f32.mrf.mxu0
        %v522 = vadd.f32 0.0, %v521
        %v523 = vpop.f32.mrf.mxu0
        %524 = vmatprep.mubr.f32.mxu0 0.0
        %525 = vmatmul.mubr.f32.gmra.mxu0 %v366
        %v526 = vpop.f32.mrf.mxu0
        %v527 = vadd.f32 0.0, %v526
        %v528 = vpop.f32.mrf.mxu0
        %529 = vmatprep.mubr.f32.mxu0 0.0
        %530 = vmatmul.mubr.f32.gmra.mxu0 %v371
        %v531 = vpop.f32.mrf.mxu0
        %v532 = vadd.f32 0.0, %v531
        %v533 = vpop.f32.mrf.mxu0
        %534 = vmatprep.mubr.f32.mxu0 0.0
        %535 = vmatmul.mubr.f32.gmra.mxu0 %v376
        %v536 = vpop.f32.mrf.mxu0
        %v537 = vadd.f32 0.0, %v536
        %v538 = vpop.f32.mrf.mxu0
        %539 = vmatprep.mubr.f32.mxu0 0.0
        %540 = vmatmul.mubr.f32.gmra.mxu0 %v381
        %v541 = vpop.f32.mrf.mxu0
        %v542 = vadd.f32 0.0, %v541
        %v543 = vpop.f32.mrf.mxu0
        %544 = vmatprep.mubr.f32.mxu0 0.0
        %545 = vmatmul.mubr.f32.gmra.mxu0 %v386
        %v546 = vpop.f32.mrf.mxu0
        %v547 = vadd.f32 0.0, %v546
        %v548 = vpop.f32.mrf.mxu0
        %549 = vmatprep.mubr.f32.mxu0 0.0
        %550 = vmatmul.mubr.f32.gmra.mxu0 %v391
        %v551 = vpop.f32.mrf.mxu0
        %v552 = vadd.f32 0.0, %v551
        %v553 = vpop.f32.mrf.mxu0
        %554 = vmatprep.mubr.f32.mxu0 0.0
        %555 = vmatmul.mubr.f32.gmra.mxu0 %v396
        %v556 = vpop.f32.mrf.mxu0
        %v557 = vadd.f32 0.0, %v556
        %v558 = vpop.f32.mrf.mxu0
        %559 = vmatprep.mubr.f32.mxu0 0.0
        %560 = vmatmul.mubr.f32.gmra.mxu0 %v401
        %v561 = vpop.f32.mrf.mxu0
        %v562 = vadd.f32 0.0, %v561
        %v563 = vpop.f32.mrf.mxu0
        %564 = vmatprep.mubr.f32.mxu0 0.0
        %565 = vmatmul.mubr.f32.gmra.mxu0 %v406
        %v566 = vpop.f32.mrf.mxu0
        %v567 = vadd.f32 0.0, %v566
        %v568 = vpop.f32.mrf.mxu0
        %569 = vmatprep.mubr.f32.mxu0 0.0
        %570 = vmatmul.mubr.f32.gmra.mxu0 %v411
        %v571 = vpop.f32.mrf.mxu0
        %v572 = vadd.f32 0.0, %v571
        %v573 = vpop.f32.mrf.mxu0
        %574 = vmatprep.mubr.f32.mxu0 0.0
        %575 = vmatmul.mubr.f32.gmra.mxu0 %v416
        %v576 = vpop.f32.mrf.mxu0
        %v577 = vadd.f32 0.0, %v576
        %v578 = vpop.f32.mrf.mxu0
        %579 = vmatprep.mubr.f32.mxu0 0.0
        %580 = vmatmul.mubr.f32.gmra.mxu0 %v421
        %v581 = vpop.f32.mrf.mxu0
        %v582 = vadd.f32 0.0, %v581
        %v583 = vpop.f32.mrf.mxu0
        %584 = vdwg.mxu0
        %v585 = vmul.f32 %v346, %v346
        %v586 = vmul.f32 %v351, %v351
        %v587 = vmul.f32 %v356, %v356
        %v588 = vmul.f32 %v361, %v361
        %v589 = vmul.f32 %v366, %v366
        %v590 = vmul.f32 %v371, %v371
        %v591 = vmul.f32 %v376, %v376
        %v592 = vmul.f32 %v381, %v381
        %v593 = vmul.f32 %v386, %v386
        %v594 = vmul.f32 %v391, %v391
        %v595 = vmul.f32 %v396, %v396
        %v596 = vmul.f32 %v401, %v401
        %v597 = vmul.f32 %v406, %v406
        %v598 = vmul.f32 %v411, %v411
        %v599 = vmul.f32 %v416, %v416
        %v600 = vmul.f32 %v421, %v421
        %601 = vadd.xlane.f32.xlu0 %v585
        %v602 = vpop.xlane.xlu0 %601
        %603 = vadd.xlane.f32.xlu0 %v586
        %v604 = vpop.xlane.xlu0 %603
        %605 = vadd.xlane.f32.xlu0 %v587
        %v606 = vpop.xlane.xlu0 %605
        %607 = vadd.xlane.f32.xlu0 %v588
        %v608 = vpop.xlane.xlu0 %607
        %609 = vadd.xlane.f32.xlu0 %v589
        %v610 = vpop.xlane.xlu0 %609
        %611 = vadd.xlane.f32.xlu0 %v590
        %v612 = vpop.xlane.xlu0 %611
        %613 = vadd.xlane.f32.xlu0 %v591
        %v614 = vpop.xlane.xlu0 %613
        %615 = vadd.xlane.f32.xlu0 %v592
        %v616 = vpop.xlane.xlu0 %615
        %617 = vadd.xlane.f32.xlu0 %v593
        %v618 = vpop.xlane.xlu0 %617
        %619 = vadd.xlane.f32.xlu0 %v594
        %v620 = vpop.xlane.xlu0 %619
        %621 = vadd.xlane.f32.xlu0 %v595
        %v622 = vpop.xlane.xlu0 %621
        %623 = vadd.xlane.f32.xlu0 %v596
        %v624 = vpop.xlane.xlu0 %623
        %625 = vadd.xlane.f32.xlu0 %v597
        %v626 = vpop.xlane.xlu0 %625
        %627 = vadd.xlane.f32.xlu0 %v598
        %v628 = vpop.xlane.xlu0 %627
        %629 = vadd.xlane.f32.xlu0 %v599
        %v630 = vpop.xlane.xlu0 %629
        %631 = vadd.xlane.f32.xlu0 %v600
        %v632 = vpop.xlane.xlu0 %631
        %v633 = vrsqrt.pop %v602
        %v634 = vmul.f32 %v602, %v633
        %vm635 = vcmp.eq.f32.partialorder %v602, inf
        %v636 = vsel %vm635, %v602, %v634
        %vm637 = vcmp.eq.f32.partialorder %v602, 0.0
        %v638 = vand.u32 %v602, 2147483648
        %v639 = vsel %vm637, %v638, %v636
        %v640 = vrsqrt.pop %v604
        %v641 = vmul.f32 %v604, %v640
        %vm642 = vcmp.eq.f32.partialorder %v604, inf
        %v643 = vsel %vm642, %v604, %v641
        %vm644 = vcmp.eq.f32.partialorder %v604, 0.0
        %v645 = vand.u32 %v604, 2147483648
        %v646 = vsel %vm644, %v645, %v643
        %v647 = vrsqrt.pop %v606
        %v648 = vmul.f32 %v606, %v647
        %vm649 = vcmp.eq.f32.partialorder %v606, inf
        %v650 = vsel %vm649, %v606, %v648
        %vm651 = vcmp.eq.f32.partialorder %v606, 0.0
        %v652 = vand.u32 %v606, 2147483648
        %v653 = vsel %vm651, %v652, %v650
        %v654 = vrsqrt.pop %v608
        %v655 = vmul.f32 %v608, %v654
        %vm656 = vcmp.eq.f32.partialorder %v608, inf
        %v657 = vsel %vm656, %v608, %v655
        %vm658 = vcmp.eq.f32.partialorder %v608, 0.0
        %v659 = vand.u32 %v608, 2147483648
        %v660 = vsel %vm658, %v659, %v657
        %v661 = vrsqrt.pop %v610
        %v662 = vmul.f32 %v610, %v661
        %vm663 = vcmp.eq.f32.partialorder %v610, inf
        %v664 = vsel %vm663, %v610, %v662
        %vm665 = vcmp.eq.f32.partialorder %v610, 0.0
        %v666 = vand.u32 %v610, 2147483648
        %v667 = vsel %vm665, %v666, %v664
        %v668 = vrsqrt.pop %v612
        %v669 = vmul.f32 %v612, %v668
        %vm670 = vcmp.eq.f32.partialorder %v612, inf
        %v671 = vsel %vm670, %v612, %v669
        %vm672 = vcmp.eq.f32.partialorder %v612, 0.0
        %v673 = vand.u32 %v612, 2147483648
        %v674 = vsel %vm672, %v673, %v671
        %v675 = vrsqrt.pop %v614
        %v676 = vmul.f32 %v614, %v675
        %vm677 = vcmp.eq.f32.partialorder %v614, inf
        %v678 = vsel %vm677, %v614, %v676
        %vm679 = vcmp.eq.f32.partialorder %v614, 0.0
        %v680 = vand.u32 %v614, 2147483648
        %v681 = vsel %vm679, %v680, %v678
        %v682 = vrsqrt.pop %v616
        %v683 = vmul.f32 %v616, %v682
        %vm684 = vcmp.eq.f32.partialorder %v616, inf
        %v685 = vsel %vm684, %v616, %v683
        %vm686 = vcmp.eq.f32.partialorder %v616, 0.0
        %v687 = vand.u32 %v616, 2147483648
        %v688 = vsel %vm686, %v687, %v685
        %v689 = vrsqrt.pop %v618
        %v690 = vmul.f32 %v618, %v689
        %vm691 = vcmp.eq.f32.partialorder %v618, inf
        %v692 = vsel %vm691, %v618, %v690
        %vm693 = vcmp.eq.f32.partialorder %v618, 0.0
        %v694 = vand.u32 %v618, 2147483648
        %v695 = vsel %vm693, %v694, %v692
        %v696 = vrsqrt.pop %v620
        %v697 = vmul.f32 %v620, %v696
        %vm698 = vcmp.eq.f32.partialorder %v620, inf
        %v699 = vsel %vm698, %v620, %v697
        %vm700 = vcmp.eq.f32.partialorder %v620, 0.0
        %v701 = vand.u32 %v620, 2147483648
        %v702 = vsel %vm700, %v701, %v699
        %v703 = vrsqrt.pop %v622
        %v704 = vmul.f32 %v622, %v703
        %vm705 = vcmp.eq.f32.partialorder %v622, inf
        %v706 = vsel %vm705, %v622, %v704
        %vm707 = vcmp.eq.f32.partialorder %v622, 0.0
        %v708 = vand.u32 %v622, 2147483648
        %v709 = vsel %vm707, %v708, %v706
        %v710 = vrsqrt.pop %v624
        %v711 = vmul.f32 %v624, %v710
        %vm712 = vcmp.eq.f32.partialorder %v624, inf
        %v713 = vsel %vm712, %v624, %v711
        %vm714 = vcmp.eq.f32.partialorder %v624, 0.0
        %v715 = vand.u32 %v624, 2147483648
        %v716 = vsel %vm714, %v715, %v713
        %v717 = vrsqrt.pop %v626
        %v718 = vmul.f32 %v626, %v717
        %vm719 = vcmp.eq.f32.partialorder %v626, inf
        %v720 = vsel %vm719, %v626, %v718
        %vm721 = vcmp.eq.f32.partialorder %v626, 0.0
        %v722 = vand.u32 %v626, 2147483648
        %v723 = vsel %vm721, %v722, %v720
        %v724 = vrsqrt.pop %v628
        %v725 = vmul.f32 %v628, %v724
        %vm726 = vcmp.eq.f32.partialorder %v628, inf
        %v727 = vsel %vm726, %v628, %v725
        %vm728 = vcmp.eq.f32.partialorder %v628, 0.0
        %v729 = vand.u32 %v628, 2147483648
        %v730 = vsel %vm728, %v729, %v727
        %v731 = vrsqrt.pop %v630
        %v732 = vmul.f32 %v630, %v731
        %vm733 = vcmp.eq.f32.partialorder %v630, inf
        %v734 = vsel %vm733, %v630, %v732
        %vm735 = vcmp.eq.f32.partialorder %v630, 0.0
        %v736 = vand.u32 %v630, 2147483648
        %v737 = vsel %vm735, %v736, %v734
        %v738 = vrsqrt.pop %v632
        %v739 = vmul.f32 %v632, %v738
        %vm740 = vcmp.eq.f32.partialorder %v632, inf
        %v741 = vsel %vm740, %v632, %v739
        %vm742 = vcmp.eq.f32.partialorder %v632, 0.0
        %v743 = vand.u32 %v632, 2147483648
        %v744 = vsel %vm742, %v743, %v741
        %v745 = vmax.f32 %v639, 1e-15
        %v746 = vmax.f32 %v646, 1e-15
        %v747 = vmax.f32 %v653, 1e-15
        %v748 = vmax.f32 %v660, 1e-15
        %v749 = vmax.f32 %v667, 1e-15
        %v750 = vmax.f32 %v674, 1e-15
        %v751 = vmax.f32 %v681, 1e-15
        %v752 = vmax.f32 %v688, 1e-15
        %v753 = vmax.f32 %v695, 1e-15
        %v754 = vmax.f32 %v702, 1e-15
        %v755 = vmax.f32 %v709, 1e-15
        %v756 = vmax.f32 %v716, 1e-15
        %v757 = vmax.f32 %v723, 1e-15
        %v758 = vmax.f32 %v730, 1e-15
        %v759 = vmax.f32 %v737, 1e-15
        %v760 = vmax.f32 %v744, 1e-15
        %v761 = vmul.f32 %v507, %v507
        %v762 = vmul.f32 %v512, %v512
        %v763 = vmul.f32 %v517, %v517
        %v764 = vmul.f32 %v522, %v522
        %v765 = vmul.f32 %v527, %v527
        %v766 = vmul.f32 %v532, %v532
        %v767 = vmul.f32 %v537, %v537
        %v768 = vmul.f32 %v542, %v542
        %v769 = vmul.f32 %v547, %v547
        %v770 = vmul.f32 %v552, %v552
        %v771 = vmul.f32 %v557, %v557
        %v772 = vmul.f32 %v562, %v562
        %v773 = vmul.f32 %v567, %v567
        %v774 = vmul.f32 %v572, %v572
        %v775 = vmul.f32 %v577, %v577
        %v776 = vmul.f32 %v582, %v582
        %777 = vadd.xlane.f32.xlu0 %v761
        %v778 = vpop.xlane.xlu0 %777
        %779 = vadd.xlane.f32.xlu0 %v762
        %v780 = vpop.xlane.xlu0 %779
        %781 = vadd.xlane.f32.xlu0 %v763
        %v782 = vpop.xlane.xlu0 %781
        %783 = vadd.xlane.f32.xlu0 %v764
        %v784 = vpop.xlane.xlu0 %783
        %785 = vadd.xlane.f32.xlu0 %v765
        %v786 = vpop.xlane.xlu0 %785
        %787 = vadd.xlane.f32.xlu0 %v766
        %v788 = vpop.xlane.xlu0 %787
        %789 = vadd.xlane.f32.xlu0 %v767
        %v790 = vpop.xlane.xlu0 %789
        %791 = vadd.xlane.f32.xlu0 %v768
        %v792 = vpop.xlane.xlu0 %791
        %793 = vadd.xlane.f32.xlu0 %v769
        %v794 = vpop.xlane.xlu0 %793
        %795 = vadd.xlane.f32.xlu0 %v770
        %v796 = vpop.xlane.xlu0 %795
        %797 = vadd.xlane.f32.xlu0 %v771
        %v798 = vpop.xlane.xlu0 %797
        %799 = vadd.xlane.f32.xlu0 %v772
        %v800 = vpop.xlane.xlu0 %799
        %801 = vadd.xlane.f32.xlu0 %v773
        %v802 = vpop.xlane.xlu0 %801
        %803 = vadd.xlane.f32.xlu0 %v774
        %v804 = vpop.xlane.xlu0 %803
        %805 = vadd.xlane.f32.xlu0 %v775
        %v806 = vpop.xlane.xlu0 %805
        %807 = vadd.xlane.f32.xlu0 %v776
        %v808 = vpop.xlane.xlu0 %807
        %v809 = vrsqrt.pop %v778
        %v810 = vmul.f32 %v778, %v809
        %vm811 = vcmp.eq.f32.partialorder %v778, inf
        %v812 = vsel %vm811, %v778, %v810
        %vm813 = vcmp.eq.f32.partialorder %v778, 0.0
        %v814 = vand.u32 %v778, 2147483648
        %v815 = vsel %vm813, %v814, %v812
        %v816 = vrsqrt.pop %v780
        %v817 = vmul.f32 %v780, %v816
        %vm818 = vcmp.eq.f32.partialorder %v780, inf
        %v819 = vsel %vm818, %v780, %v817
        %vm820 = vcmp.eq.f32.partialorder %v780, 0.0
        %v821 = vand.u32 %v780, 2147483648
        %v822 = vsel %vm820, %v821, %v819
        %v823 = vrsqrt.pop %v782
        %v824 = vmul.f32 %v782, %v823
        %vm825 = vcmp.eq.f32.partialorder %v782, inf
        %v826 = vsel %vm825, %v782, %v824
        %vm827 = vcmp.eq.f32.partialorder %v782, 0.0
        %v828 = vand.u32 %v782, 2147483648
        %v829 = vsel %vm827, %v828, %v826
        %v830 = vrsqrt.pop %v784
        %v831 = vmul.f32 %v784, %v830
        %vm832 = vcmp.eq.f32.partialorder %v784, inf
        %v833 = vsel %vm832, %v784, %v831
        %vm834 = vcmp.eq.f32.partialorder %v784, 0.0
        %v835 = vand.u32 %v784, 2147483648
        %v836 = vsel %vm834, %v835, %v833
        %v837 = vrsqrt.pop %v786
        %v838 = vmul.f32 %v786, %v837
        %vm839 = vcmp.eq.f32.partialorder %v786, inf
        %v840 = vsel %vm839, %v786, %v838
        %vm841 = vcmp.eq.f32.partialorder %v786, 0.0
        %v842 = vand.u32 %v786, 2147483648
        %v843 = vsel %vm841, %v842, %v840
        %v844 = vrsqrt.pop %v788
        %v845 = vmul.f32 %v788, %v844
        %vm846 = vcmp.eq.f32.partialorder %v788, inf
        %v847 = vsel %vm846, %v788, %v845
        %vm848 = vcmp.eq.f32.partialorder %v788, 0.0
        %v849 = vand.u32 %v788, 2147483648
        %v850 = vsel %vm848, %v849, %v847
        %v851 = vrsqrt.pop %v790
        %v852 = vmul.f32 %v790, %v851
        %vm853 = vcmp.eq.f32.partialorder %v790, inf
        %v854 = vsel %vm853, %v790, %v852
        %vm855 = vcmp.eq.f32.partialorder %v790, 0.0
        %v856 = vand.u32 %v790, 2147483648
        %v857 = vsel %vm855, %v856, %v854
        %v858 = vrsqrt.pop %v792
        %v859 = vmul.f32 %v792, %v858
        %vm860 = vcmp.eq.f32.partialorder %v792, inf
        %v861 = vsel %vm860, %v792, %v859
        %vm862 = vcmp.eq.f32.partialorder %v792, 0.0
        %v863 = vand.u32 %v792, 2147483648
        %v864 = vsel %vm862, %v863, %v861
        %v865 = vrsqrt.pop %v794
        %v866 = vmul.f32 %v794, %v865
        %vm867 = vcmp.eq.f32.partialorder %v794, inf
        %v868 = vsel %vm867, %v794, %v866
        %vm869 = vcmp.eq.f32.partialorder %v794, 0.0
        %v870 = vand.u32 %v794, 2147483648
        %v871 = vsel %vm869, %v870, %v868
        %v872 = vrsqrt.pop %v796
        %v873 = vmul.f32 %v796, %v872
        %vm874 = vcmp.eq.f32.partialorder %v796, inf
        %v875 = vsel %vm874, %v796, %v873
        %vm876 = vcmp.eq.f32.partialorder %v796, 0.0
        %v877 = vand.u32 %v796, 2147483648
        %v878 = vsel %vm876, %v877, %v875
        %v879 = vrsqrt.pop %v798
        %v880 = vmul.f32 %v798, %v879
        %vm881 = vcmp.eq.f32.partialorder %v798, inf
        %v882 = vsel %vm881, %v798, %v880
        %vm883 = vcmp.eq.f32.partialorder %v798, 0.0
        %v884 = vand.u32 %v798, 2147483648
        %v885 = vsel %vm883, %v884, %v882
        %v886 = vrsqrt.pop %v800
        %v887 = vmul.f32 %v800, %v886
        %vm888 = vcmp.eq.f32.partialorder %v800, inf
        %v889 = vsel %vm888, %v800, %v887
        %vm890 = vcmp.eq.f32.partialorder %v800, 0.0
        %v891 = vand.u32 %v800, 2147483648
        %v892 = vsel %vm890, %v891, %v889
        %v893 = vrsqrt.pop %v802
        %v894 = vmul.f32 %v802, %v893
        %vm895 = vcmp.eq.f32.partialorder %v802, inf
        %v896 = vsel %vm895, %v802, %v894
        %vm897 = vcmp.eq.f32.partialorder %v802, 0.0
        %v898 = vand.u32 %v802, 2147483648
        %v899 = vsel %vm897, %v898, %v896
        %v900 = vrsqrt.pop %v804
        %v901 = vmul.f32 %v804, %v900
        %vm902 = vcmp.eq.f32.partialorder %v804, inf
        %v903 = vsel %vm902, %v804, %v901
        %vm904 = vcmp.eq.f32.partialorder %v804, 0.0
        %v905 = vand.u32 %v804, 2147483648
        %v906 = vsel %vm904, %v905, %v903
        %v907 = vrsqrt.pop %v806
        %v908 = vmul.f32 %v806, %v907
        %vm909 = vcmp.eq.f32.partialorder %v806, inf
        %v910 = vsel %vm909, %v806, %v908
        %vm911 = vcmp.eq.f32.partialorder %v806, 0.0
        %v912 = vand.u32 %v806, 2147483648
        %v913 = vsel %vm911, %v912, %v910
        %v914 = vrsqrt.pop %v808
        %v915 = vmul.f32 %v808, %v914
        %vm916 = vcmp.eq.f32.partialorder %v808, inf
        %v917 = vsel %vm916, %v808, %v915
        %vm918 = vcmp.eq.f32.partialorder %v808, 0.0
        %v919 = vand.u32 %v808, 2147483648
        %v920 = vsel %vm918, %v919, %v917
        %v921 = vmax.f32 %v815, 1e-15
        %v922 = vmax.f32 %v822, 1e-15
        %v923 = vmax.f32 %v829, 1e-15
        %v924 = vmax.f32 %v836, 1e-15
        %v925 = vmax.f32 %v843, 1e-15
        %v926 = vmax.f32 %v850, 1e-15
        %v927 = vmax.f32 %v857, 1e-15
        %v928 = vmax.f32 %v864, 1e-15
        %v929 = vmax.f32 %v871, 1e-15
        %v930 = vmax.f32 %v878, 1e-15
        %v931 = vmax.f32 %v885, 1e-15
        %v932 = vmax.f32 %v892, 1e-15
        %v933 = vmax.f32 %v899, 1e-15
        %v934 = vmax.f32 %v906, 1e-15
        %v935 = vmax.f32 %v913, 1e-15
        %v936 = vmax.f32 %v920, 1e-15
        %v937 = vrcp.pop %v745
        %v938 = vmul.f32 %v921, %v937
        %v939 = vrcp.pop %v746
        %v940 = vmul.f32 %v922, %v939
        %v941 = vrcp.pop %v747
        %v942 = vmul.f32 %v923, %v941
        %v943 = vrcp.pop %v748
        %v944 = vmul.f32 %v924, %v943
        %v945 = vrcp.pop %v749
        %v946 = vmul.f32 %v925, %v945
        %v947 = vrcp.pop %v750
        %v948 = vmul.f32 %v926, %v947
        %v949 = vrcp.pop %v751
        %v950 = vmul.f32 %v927, %v949
        %v951 = vrcp.pop %v752
        %v952 = vmul.f32 %v928, %v951
        %v953 = vrcp.pop %v753
        %v954 = vmul.f32 %v929, %v953
        %v955 = vrcp.pop %v754
        %v956 = vmul.f32 %v930, %v955
        %v957 = vrcp.pop %v755
        %v958 = vmul.f32 %v931, %v957
        %v959 = vrcp.pop %v756
        %v960 = vmul.f32 %v932, %v959
        %v961 = vrcp.pop %v757
        %v962 = vmul.f32 %v933, %v961
        %v963 = vrcp.pop %v758
        %v964 = vmul.f32 %v934, %v963
        %v965 = vrcp.pop %v759
        %v966 = vmul.f32 %v935, %v965
        %v967 = vrcp.pop %v760
        %v968 = vmul.f32 %v936, %v967
        %v969 = vmul.f32 %v745, 0.1
        %v970 = vmul.f32 %v746, 0.1
        %v971 = vmul.f32 %v747, 0.1
        %v972 = vmul.f32 %v748, 0.1
        %v973 = vmul.f32 %v749, 0.1
        %v974 = vmul.f32 %v750, 0.1
        %v975 = vmul.f32 %v751, 0.1
        %v976 = vmul.f32 %v752, 0.1
        %v977 = vmul.f32 %v753, 0.1
        %v978 = vmul.f32 %v754, 0.1
        %v979 = vmul.f32 %v755, 0.1
        %v980 = vmul.f32 %v756, 0.1
        %v981 = vmul.f32 %v757, 0.1
        %v982 = vmul.f32 %v758, 0.1
        %v983 = vmul.f32 %v759, 0.1
        %v984 = vmul.f32 %v760, 0.1
        %v985 = vmax.f32 %v969, -0.99999
        %v986 = vmax.f32 %v970, -0.99999
        %v987 = vmax.f32 %v971, -0.99999
        %v988 = vmax.f32 %v972, -0.99999
        %v989 = vmax.f32 %v973, -0.99999
        %v990 = vmax.f32 %v974, -0.99999
        %v991 = vmax.f32 %v975, -0.99999
        %v992 = vmax.f32 %v976, -0.99999
        %v993 = vmax.f32 %v977, -0.99999
        %v994 = vmax.f32 %v978, -0.99999
        %v995 = vmax.f32 %v979, -0.99999
        %v996 = vmax.f32 %v980, -0.99999
        %v997 = vmax.f32 %v981, -0.99999
        %v998 = vmax.f32 %v982, -0.99999
        %v999 = vmax.f32 %v983, -0.99999
        %v1000 = vmax.f32 %v984, -0.99999
        %v1001 = vmin.f32 %v985, 0.99999
        %v1002 = vmin.f32 %v986, 0.99999
        %v1003 = vmin.f32 %v987, 0.99999
        %v1004 = vmin.f32 %v988, 0.99999
        %v1005 = vmin.f32 %v989, 0.99999
        %v1006 = vmin.f32 %v990, 0.99999
        %v1007 = vmin.f32 %v991, 0.99999
        %v1008 = vmin.f32 %v992, 0.99999
        %v1009 = vmin.f32 %v993, 0.99999
        %v1010 = vmin.f32 %v994, 0.99999
        %v1011 = vmin.f32 %v995, 0.99999
        %v1012 = vmin.f32 %v996, 0.99999
        %v1013 = vmin.f32 %v997, 0.99999
        %v1014 = vmin.f32 %v998, 0.99999
        %v1015 = vmin.f32 %v999, 0.99999
        %v1016 = vmin.f32 %v1000, 0.99999
        %v1017 = vadd.f32 %v1001, 1.0
        %v1018 = vadd.f32 %v1002, 1.0
        %v1019 = vadd.f32 %v1003, 1.0
        %v1020 = vadd.f32 %v1004, 1.0
        %v1021 = vadd.f32 %v1005, 1.0
        %v1022 = vadd.f32 %v1006, 1.0
        %v1023 = vadd.f32 %v1007, 1.0
        %v1024 = vadd.f32 %v1008, 1.0
        %v1025 = vadd.f32 %v1009, 1.0
        %v1026 = vadd.f32 %v1010, 1.0
        %v1027 = vadd.f32 %v1011, 1.0
        %v1028 = vadd.f32 %v1012, 1.0
        %v1029 = vadd.f32 %v1013, 1.0
        %v1030 = vadd.f32 %v1014, 1.0
        %v1031 = vadd.f32 %v1015, 1.0
        %v1032 = vadd.f32 %v1016, 1.0
        %v1033 = vsub.f32 1.0, %v1001
        %v1034 = vsub.f32 1.0, %v1002
        %v1035 = vsub.f32 1.0, %v1003
        %v1036 = vsub.f32 1.0, %v1004
        %v1037 = vsub.f32 1.0, %v1005
        %v1038 = vsub.f32 1.0, %v1006
        %v1039 = vsub.f32 1.0, %v1007
        %v1040 = vsub.f32 1.0, %v1008
        %v1041 = vsub.f32 1.0, %v1009
        %v1042 = vsub.f32 1.0, %v1010
        %v1043 = vsub.f32 1.0, %v1011
        %v1044 = vsub.f32 1.0, %v1012
        %v1045 = vsub.f32 1.0, %v1013
        %v1046 = vsub.f32 1.0, %v1014
        %v1047 = vsub.f32 1.0, %v1015
        %v1048 = vsub.f32 1.0, %v1016
        %v1049 = vrcp.pop %v1033
        %v1050 = vmul.f32 %v1017, %v1049
        %v1051 = vrcp.pop %v1034
        %v1052 = vmul.f32 %v1018, %v1051
        %v1053 = vrcp.pop %v1035
        %v1054 = vmul.f32 %v1019, %v1053
        %v1055 = vrcp.pop %v1036
        %v1056 = vmul.f32 %v1020, %v1055
        %v1057 = vrcp.pop %v1037
        %v1058 = vmul.f32 %v1021, %v1057
        %v1059 = vrcp.pop %v1038
        %v1060 = vmul.f32 %v1022, %v1059
        %v1061 = vrcp.pop %v1039
        %v1062 = vmul.f32 %v1023, %v1061
        %v1063 = vrcp.pop %v1040
        %v1064 = vmul.f32 %v1024, %v1063
        %v1065 = vrcp.pop %v1041
        %v1066 = vmul.f32 %v1025, %v1065
        %v1067 = vrcp.pop %v1042
        %v1068 = vmul.f32 %v1026, %v1067
        %v1069 = vrcp.pop %v1043
        %v1070 = vmul.f32 %v1027, %v1069
        %v1071 = vrcp.pop %v1044
        %v1072 = vmul.f32 %v1028, %v1071
        %v1073 = vrcp.pop %v1045
        %v1074 = vmul.f32 %v1029, %v1073
        %v1075 = vrcp.pop %v1046
        %v1076 = vmul.f32 %v1030, %v1075
        %v1077 = vrcp.pop %v1047
        %v1078 = vmul.f32 %v1031, %v1077
        %v1079 = vrcp.pop %v1048
        %v1080 = vmul.f32 %v1032, %v1079
        %v1081 = vlog2.pop %v1050
        %v1082 = vmul.f32 %v1081, 0.6931472
        %v1083 = vlog2.pop %v1052
        %v1084 = vmul.f32 %v1083, 0.6931472
        %v1085 = vlog2.pop %v1054
        %v1086 = vmul.f32 %v1085, 0.6931472
        %v1087 = vlog2.pop %v1056
        %v1088 = vmul.f32 %v1087, 0.6931472
        %v1089 = vlog2.pop %v1058
        %v1090 = vmul.f32 %v1089, 0.6931472
        %v1091 = vlog2.pop %v1060
        %v1092 = vmul.f32 %v1091, 0.6931472
        %v1093 = vlog2.pop %v1062
        %v1094 = vmul.f32 %v1093, 0.6931472
        %v1095 = vlog2.pop %v1064
        %v1096 = vmul.f32 %v1095, 0.6931472
        %v1097 = vlog2.pop %v1066
        %v1098 = vmul.f32 %v1097, 0.6931472
        %v1099 = vlog2.pop %v1068
        %v1100 = vmul.f32 %v1099, 0.6931472
        %v1101 = vlog2.pop %v1070
        %v1102 = vmul.f32 %v1101, 0.6931472
        %v1103 = vlog2.pop %v1072
        %v1104 = vmul.f32 %v1103, 0.6931472
        %v1105 = vlog2.pop %v1074
        %v1106 = vmul.f32 %v1105, 0.6931472
        %v1107 = vlog2.pop %v1076
        %v1108 = vmul.f32 %v1107, 0.6931472
        %v1109 = vlog2.pop %v1078
        %v1110 = vmul.f32 %v1109, 0.6931472
        %v1111 = vlog2.pop %v1080
        %v1112 = vmul.f32 %v1111, 0.6931472
        %v1113 = vmul.f32 %v1082, 0.5
        %v1114 = vmul.f32 %v1084, 0.5
        %v1115 = vmul.f32 %v1086, 0.5
        %v1116 = vmul.f32 %v1088, 0.5
        %v1117 = vmul.f32 %v1090, 0.5
        %v1118 = vmul.f32 %v1092, 0.5
        %v1119 = vmul.f32 %v1094, 0.5
        %v1120 = vmul.f32 %v1096, 0.5
        %v1121 = vmul.f32 %v1098, 0.5
        %v1122 = vmul.f32 %v1100, 0.5
        %v1123 = vmul.f32 %v1102, 0.5
        %v1124 = vmul.f32 %v1104, 0.5
        %v1125 = vmul.f32 %v1106, 0.5
        %v1126 = vmul.f32 %v1108, 0.5
        %v1127 = vmul.f32 %v1110, 0.5
        %v1128 = vmul.f32 %v1112, 0.5
        %v1129 = vmul.f32 %v938, %v1113
        %v1130 = vmul.f32 %v940, %v1114
        %v1131 = vmul.f32 %v942, %v1115
        %v1132 = vmul.f32 %v944, %v1116
        %v1133 = vmul.f32 %v946, %v1117
        %v1134 = vmul.f32 %v948, %v1118
        %v1135 = vmul.f32 %v950, %v1119
        %v1136 = vmul.f32 %v952, %v1120
        %v1137 = vmul.f32 %v954, %v1121
        %v1138 = vmul.f32 %v956, %v1122
        %v1139 = vmul.f32 %v958, %v1123
        %v1140 = vmul.f32 %v960, %v1124
        %v1141 = vmul.f32 %v962, %v1125
        %v1142 = vmul.f32 %v964, %v1126
        %v1143 = vmul.f32 %v966, %v1127
        %v1144 = vmul.f32 %v968, %v1128
        %v1145 = vtanh.pop %v1129
        %v1146 = vtanh.pop %v1130
        %v1147 = vtanh.pop %v1131
        %v1148 = vtanh.pop %v1132
        %v1149 = vtanh.pop %v1133
        %v1150 = vtanh.pop %v1134
        %v1151 = vtanh.pop %v1135
        %v1152 = vtanh.pop %v1136
        %v1153 = vtanh.pop %v1137
        %v1154 = vtanh.pop %v1138
        %v1155 = vtanh.pop %v1139
        %v1156 = vtanh.pop %v1140
        %v1157 = vtanh.pop %v1141
        %v1158 = vtanh.pop %v1142
        %v1159 = vtanh.pop %v1143
        %v1160 = vtanh.pop %v1144
        %v1161 = vmul.f32 %v1145, %v507
        %v1162 = vmul.f32 %v1146, %v512
        %v1163 = vmul.f32 %v1147, %v517
        %v1164 = vmul.f32 %v1148, %v522
        %v1165 = vmul.f32 %v1149, %v527
        %v1166 = vmul.f32 %v1150, %v532
        %v1167 = vmul.f32 %v1151, %v537
        %v1168 = vmul.f32 %v1152, %v542
        %v1169 = vmul.f32 %v1153, %v547
        %v1170 = vmul.f32 %v1154, %v552
        %v1171 = vmul.f32 %v1155, %v557
        %v1172 = vmul.f32 %v1156, %v562
        %v1173 = vmul.f32 %v1157, %v567
        %v1174 = vmul.f32 %v1158, %v572
        %v1175 = vmul.f32 %v1159, %v577
        %v1176 = vmul.f32 %v1160, %v582
        %v1177 = vmul.f32 %v921, 0.1
        %v1178 = vmul.f32 %v922, 0.1
        %v1179 = vmul.f32 %v923, 0.1
        %v1180 = vmul.f32 %v924, 0.1
        %v1181 = vmul.f32 %v925, 0.1
        %v1182 = vmul.f32 %v926, 0.1
        %v1183 = vmul.f32 %v927, 0.1
        %v1184 = vmul.f32 %v928, 0.1
        %v1185 = vmul.f32 %v929, 0.1
        %v1186 = vmul.f32 %v930, 0.1
        %v1187 = vmul.f32 %v931, 0.1
        %v1188 = vmul.f32 %v932, 0.1
        %v1189 = vmul.f32 %v933, 0.1
        %v1190 = vmul.f32 %v934, 0.1
        %v1191 = vmul.f32 %v935, 0.1
        %v1192 = vmul.f32 %v936, 0.1
        %v1193 = vrcp.pop %v1177
        %v1194 = vmul.f32 %v1161, %v1193
        %v1195 = vrcp.pop %v1178
        %v1196 = vmul.f32 %v1162, %v1195
        %v1197 = vrcp.pop %v1179
        %v1198 = vmul.f32 %v1163, %v1197
        %v1199 = vrcp.pop %v1180
        %v1200 = vmul.f32 %v1164, %v1199
        %v1201 = vrcp.pop %v1181
        %v1202 = vmul.f32 %v1165, %v1201
        %v1203 = vrcp.pop %v1182
        %v1204 = vmul.f32 %v1166, %v1203
        %v1205 = vrcp.pop %v1183
        %v1206 = vmul.f32 %v1167, %v1205
        %v1207 = vrcp.pop %v1184
        %v1208 = vmul.f32 %v1168, %v1207
        %v1209 = vrcp.pop %v1185
        %v1210 = vmul.f32 %v1169, %v1209
        %v1211 = vrcp.pop %v1186
        %v1212 = vmul.f32 %v1170, %v1211
        %v1213 = vrcp.pop %v1187
        %v1214 = vmul.f32 %v1171, %v1213
        %v1215 = vrcp.pop %v1188
        %v1216 = vmul.f32 %v1172, %v1215
        %v1217 = vrcp.pop %v1189
        %v1218 = vmul.f32 %v1173, %v1217
        %v1219 = vrcp.pop %v1190
        %v1220 = vmul.f32 %v1174, %v1219
        %v1221 = vrcp.pop %v1191
        %v1222 = vmul.f32 %v1175, %v1221
        %v1223 = vrcp.pop %v1192
        %v1224 = vmul.f32 %v1176, %v1223
        %v1225 = vand.u32 2147483647, %v507
        %v1226 = vand.u32 2147483647, %v512
        %v1227 = vand.u32 2147483647, %v517
        %v1228 = vand.u32 2147483647, %v522
        %v1229 = vand.u32 2147483647, %v527
        %v1230 = vand.u32 2147483647, %v532
        %v1231 = vand.u32 2147483647, %v537
        %v1232 = vand.u32 2147483647, %v542
        %v1233 = vand.u32 2147483647, %v547
        %v1234 = vand.u32 2147483647, %v552
        %v1235 = vand.u32 2147483647, %v557
        %v1236 = vand.u32 2147483647, %v562
        %v1237 = vand.u32 2147483647, %v567
        %v1238 = vand.u32 2147483647, %v572
        %v1239 = vand.u32 2147483647, %v577
        %v1240 = vand.u32 2147483647, %v582
        %1241 = vadd.xlane.f32.xlu0 %v1225
        %v1242 = vpop.xlane.xlu0 %1241
        %1243 = vadd.xlane.f32.xlu0 %v1226
        %v1244 = vpop.xlane.xlu0 %1243
        %1245 = vadd.xlane.f32.xlu0 %v1227
        %v1246 = vpop.xlane.xlu0 %1245
        %1247 = vadd.xlane.f32.xlu0 %v1228
        %v1248 = vpop.xlane.xlu0 %1247
        %1249 = vadd.xlane.f32.xlu0 %v1229
        %v1250 = vpop.xlane.xlu0 %1249
        %1251 = vadd.xlane.f32.xlu0 %v1230
        %v1252 = vpop.xlane.xlu0 %1251
        %1253 = vadd.xlane.f32.xlu0 %v1231
        %v1254 = vpop.xlane.xlu0 %1253
        %1255 = vadd.xlane.f32.xlu0 %v1232
        %v1256 = vpop.xlane.xlu0 %1255
        %1257 = vadd.xlane.f32.xlu0 %v1233
        %v1258 = vpop.xlane.xlu0 %1257
        %1259 = vadd.xlane.f32.xlu0 %v1234
        %v1260 = vpop.xlane.xlu0 %1259
        %1261 = vadd.xlane.f32.xlu0 %v1235
        %v1262 = vpop.xlane.xlu0 %1261
        %1263 = vadd.xlane.f32.xlu0 %v1236
        %v1264 = vpop.xlane.xlu0 %1263
        %1265 = vadd.xlane.f32.xlu0 %v1237
        %v1266 = vpop.xlane.xlu0 %1265
        %1267 = vadd.xlane.f32.xlu0 %v1238
        %v1268 = vpop.xlane.xlu0 %1267
        %1269 = vadd.xlane.f32.xlu0 %v1239
        %v1270 = vpop.xlane.xlu0 %1269
        %1271 = vadd.xlane.f32.xlu0 %v1240
        %v1272 = vpop.xlane.xlu0 %1271
        %vm1273 = vcmp.le.f32.partialorder %v1242, 0.0
        %vm1274 = vcmp.le.f32.partialorder %v1244, 0.0
        %vm1275 = vcmp.le.f32.partialorder %v1246, 0.0
        %vm1276 = vcmp.le.f32.partialorder %v1248, 0.0
        %vm1277 = vcmp.le.f32.partialorder %v1250, 0.0
        %vm1278 = vcmp.le.f32.partialorder %v1252, 0.0
        %vm1279 = vcmp.le.f32.partialorder %v1254, 0.0
        %vm1280 = vcmp.le.f32.partialorder %v1256, 0.0
        %vm1281 = vcmp.le.f32.partialorder %v1258, 0.0
        %vm1282 = vcmp.le.f32.partialorder %v1260, 0.0
        %vm1283 = vcmp.le.f32.partialorder %v1262, 0.0
        %vm1284 = vcmp.le.f32.partialorder %v1264, 0.0
        %vm1285 = vcmp.le.f32.partialorder %v1266, 0.0
        %vm1286 = vcmp.le.f32.partialorder %v1268, 0.0
        %vm1287 = vcmp.le.f32.partialorder %v1270, 0.0
        %vm1288 = vcmp.le.f32.partialorder %v1272, 0.0
        %v1289 = vsel %vm1273, 1, 0
        %v1290 = vsel %vm1274, 1, 0
        %v1291 = vsel %vm1275, 1, 0
        %v1292 = vsel %vm1276, 1, 0
        %v1293 = vsel %vm1277, 1, 0
        %v1294 = vsel %vm1278, 1, 0
        %v1295 = vsel %vm1279, 1, 0
        %v1296 = vsel %vm1280, 1, 0
        %v1297 = vsel %vm1281, 1, 0
        %v1298 = vsel %vm1282, 1, 0
        %v1299 = vsel %vm1283, 1, 0
        %v1300 = vsel %vm1284, 1, 0
        %v1301 = vsel %vm1285, 1, 0
        %v1302 = vsel %vm1286, 1, 0
        %v1303 = vsel %vm1287, 1, 0
        %v1304 = vsel %vm1288, 1, 0
        %vm1305 = vcmp.eq.s32.totalorder %v1289, 1
        %vm1306 = vcmp.eq.s32.totalorder %v1290, 1
        %vm1307 = vcmp.eq.s32.totalorder %v1291, 1
        %vm1308 = vcmp.eq.s32.totalorder %v1292, 1
        %vm1309 = vcmp.eq.s32.totalorder %v1293, 1
        %vm1310 = vcmp.eq.s32.totalorder %v1294, 1
        %vm1311 = vcmp.eq.s32.totalorder %v1295, 1
        %vm1312 = vcmp.eq.s32.totalorder %v1296, 1
        %vm1313 = vcmp.eq.s32.totalorder %v1297, 1
        %vm1314 = vcmp.eq.s32.totalorder %v1298, 1
        %vm1315 = vcmp.eq.s32.totalorder %v1299, 1
        %vm1316 = vcmp.eq.s32.totalorder %v1300, 1
        %vm1317 = vcmp.eq.s32.totalorder %v1301, 1
        %vm1318 = vcmp.eq.s32.totalorder %v1302, 1
        %vm1319 = vcmp.eq.s32.totalorder %v1303, 1
        %vm1320 = vcmp.eq.s32.totalorder %v1304, 1
        %v1321 = vsel %vm1305, 0.0, %v1194
        %v1322 = vsel %vm1306, 0.0, %v1196
        %v1323 = vsel %vm1307, 0.0, %v1198
        %v1324 = vsel %vm1308, 0.0, %v1200
        %v1325 = vsel %vm1309, 0.0, %v1202
        %v1326 = vsel %vm1310, 0.0, %v1204
        %v1327 = vsel %vm1311, 0.0, %v1206
        %v1328 = vsel %vm1312, 0.0, %v1208
        %v1329 = vsel %vm1313, 0.0, %v1210
        %v1330 = vsel %vm1314, 0.0, %v1212
        %v1331 = vsel %vm1315, 0.0, %v1214
        %v1332 = vsel %vm1316, 0.0, %v1216
        %v1333 = vsel %vm1317, 0.0, %v1218
        %v1334 = vsel %vm1318, 0.0, %v1220
        %v1335 = vsel %vm1319, 0.0, %v1222
        %v1336 = vsel %vm1320, 0.0, %v1224
        %v1337 = vmul.f32 %v1321, %v1321
        %v1338 = vmul.f32 %v1322, %v1322
        %v1339 = vmul.f32 %v1323, %v1323
        %v1340 = vmul.f32 %v1324, %v1324
        %v1341 = vmul.f32 %v1325, %v1325
        %v1342 = vmul.f32 %v1326, %v1326
        %v1343 = vmul.f32 %v1327, %v1327
        %v1344 = vmul.f32 %v1328, %v1328
        %v1345 = vmul.f32 %v1329, %v1329
        %v1346 = vmul.f32 %v1330, %v1330
        %v1347 = vmul.f32 %v1331, %v1331
        %v1348 = vmul.f32 %v1332, %v1332
        %v1349 = vmul.f32 %v1333, %v1333
        %v1350 = vmul.f32 %v1334, %v1334
        %v1351 = vmul.f32 %v1335, %v1335
        %v1352 = vmul.f32 %v1336, %v1336
        %1353 = vadd.xlane.f32.xlu0 %v1337
        %v1354 = vpop.xlane.xlu0 %1353
        %1355 = vadd.xlane.f32.xlu0 %v1338
        %v1356 = vpop.xlane.xlu0 %1355
        %1357 = vadd.xlane.f32.xlu0 %v1339
        %v1358 = vpop.xlane.xlu0 %1357
        %1359 = vadd.xlane.f32.xlu0 %v1340
        %v1360 = vpop.xlane.xlu0 %1359
        %1361 = vadd.xlane.f32.xlu0 %v1341
        %v1362 = vpop.xlane.xlu0 %1361
        %1363 = vadd.xlane.f32.xlu0 %v1342
        %v1364 = vpop.xlane.xlu0 %1363
        %1365 = vadd.xlane.f32.xlu0 %v1343
        %v1366 = vpop.xlane.xlu0 %1365
        %1367 = vadd.xlane.f32.xlu0 %v1344
        %v1368 = vpop.xlane.xlu0 %1367
        %1369 = vadd.xlane.f32.xlu0 %v1345
        %v1370 = vpop.xlane.xlu0 %1369
        %1371 = vadd.xlane.f32.xlu0 %v1346
        %v1372 = vpop.xlane.xlu0 %1371
        %1373 = vadd.xlane.f32.xlu0 %v1347
        %v1374 = vpop.xlane.xlu0 %1373
        %1375 = vadd.xlane.f32.xlu0 %v1348
        %v1376 = vpop.xlane.xlu0 %1375
        %1377 = vadd.xlane.f32.xlu0 %v1349
        %v1378 = vpop.xlane.xlu0 %1377
        %1379 = vadd.xlane.f32.xlu0 %v1350
        %v1380 = vpop.xlane.xlu0 %1379
        %1381 = vadd.xlane.f32.xlu0 %v1351
        %v1382 = vpop.xlane.xlu0 %1381
        %1383 = vadd.xlane.f32.xlu0 %v1352
        %v1384 = vpop.xlane.xlu0 %1383
        %v1385 = vrsqrt.pop %v1354
        %v1386 = vmul.f32 %v1354, %v1385
        %vm1387 = vcmp.eq.f32.partialorder %v1354, inf
        %v1388 = vsel %vm1387, %v1354, %v1386
        %vm1389 = vcmp.eq.f32.partialorder %v1354, 0.0
        %v1390 = vand.u32 %v1354, 2147483648
        %v1391 = vsel %vm1389, %v1390, %v1388
        %v1392 = vrsqrt.pop %v1356
        %v1393 = vmul.f32 %v1356, %v1392
        %vm1394 = vcmp.eq.f32.partialorder %v1356, inf
        %v1395 = vsel %vm1394, %v1356, %v1393
        %vm1396 = vcmp.eq.f32.partialorder %v1356, 0.0
        %v1397 = vand.u32 %v1356, 2147483648
        %v1398 = vsel %vm1396, %v1397, %v1395
        %v1399 = vrsqrt.pop %v1358
        %v1400 = vmul.f32 %v1358, %v1399
        %vm1401 = vcmp.eq.f32.partialorder %v1358, inf
        %v1402 = vsel %vm1401, %v1358, %v1400
        %vm1403 = vcmp.eq.f32.partialorder %v1358, 0.0
        %v1404 = vand.u32 %v1358, 2147483648
        %v1405 = vsel %vm1403, %v1404, %v1402
        %v1406 = vrsqrt.pop %v1360
        %v1407 = vmul.f32 %v1360, %v1406
        %vm1408 = vcmp.eq.f32.partialorder %v1360, inf
        %v1409 = vsel %vm1408, %v1360, %v1407
        %vm1410 = vcmp.eq.f32.partialorder %v1360, 0.0
        %v1411 = vand.u32 %v1360, 2147483648
        %v1412 = vsel %vm1410, %v1411, %v1409
        %v1413 = vrsqrt.pop %v1362
        %v1414 = vmul.f32 %v1362, %v1413
        %vm1415 = vcmp.eq.f32.partialorder %v1362, inf
        %v1416 = vsel %vm1415, %v1362, %v1414
        %vm1417 = vcmp.eq.f32.partialorder %v1362, 0.0
        %v1418 = vand.u32 %v1362, 2147483648
        %v1419 = vsel %vm1417, %v1418, %v1416
        %v1420 = vrsqrt.pop %v1364
        %v1421 = vmul.f32 %v1364, %v1420
        %vm1422 = vcmp.eq.f32.partialorder %v1364, inf
        %v1423 = vsel %vm1422, %v1364, %v1421
        %vm1424 = vcmp.eq.f32.partialorder %v1364, 0.0
        %v1425 = vand.u32 %v1364, 2147483648
        %v1426 = vsel %vm1424, %v1425, %v1423
        %v1427 = vrsqrt.pop %v1366
        %v1428 = vmul.f32 %v1366, %v1427
        %vm1429 = vcmp.eq.f32.partialorder %v1366, inf
        %v1430 = vsel %vm1429, %v1366, %v1428
        %vm1431 = vcmp.eq.f32.partialorder %v1366, 0.0
        %v1432 = vand.u32 %v1366, 2147483648
        %v1433 = vsel %vm1431, %v1432, %v1430
        %v1434 = vrsqrt.pop %v1368
        %v1435 = vmul.f32 %v1368, %v1434
        %vm1436 = vcmp.eq.f32.partialorder %v1368, inf
        %v1437 = vsel %vm1436, %v1368, %v1435
        %vm1438 = vcmp.eq.f32.partialorder %v1368, 0.0
        %v1439 = vand.u32 %v1368, 2147483648
        %v1440 = vsel %vm1438, %v1439, %v1437
        %v1441 = vrsqrt.pop %v1370
        %v1442 = vmul.f32 %v1370, %v1441
        %vm1443 = vcmp.eq.f32.partialorder %v1370, inf
        %v1444 = vsel %vm1443, %v1370, %v1442
        %vm1445 = vcmp.eq.f32.partialorder %v1370, 0.0
        %v1446 = vand.u32 %v1370, 2147483648
        %v1447 = vsel %vm1445, %v1446, %v1444
        %v1448 = vrsqrt.pop %v1372
        %v1449 = vmul.f32 %v1372, %v1448
        %vm1450 = vcmp.eq.f32.partialorder %v1372, inf
        %v1451 = vsel %vm1450, %v1372, %v1449
        %vm1452 = vcmp.eq.f32.partialorder %v1372, 0.0
        %v1453 = vand.u32 %v1372, 2147483648
        %v1454 = vsel %vm1452, %v1453, %v1451
        %v1455 = vrsqrt.pop %v1374
        %v1456 = vmul.f32 %v1374, %v1455
        %vm1457 = vcmp.eq.f32.partialorder %v1374, inf
        %v1458 = vsel %vm1457, %v1374, %v1456
        %vm1459 = vcmp.eq.f32.partialorder %v1374, 0.0
        %v1460 = vand.u32 %v1374, 2147483648
        %v1461 = vsel %vm1459, %v1460, %v1458
        %v1462 = vrsqrt.pop %v1376
        %v1463 = vmul.f32 %v1376, %v1462
        %vm1464 = vcmp.eq.f32.partialorder %v1376, inf
        %v1465 = vsel %vm1464, %v1376, %v1463
        %vm1466 = vcmp.eq.f32.partialorder %v1376, 0.0
        %v1467 = vand.u32 %v1376, 2147483648
        %v1468 = vsel %vm1466, %v1467, %v1465
        %v1469 = vrsqrt.pop %v1378
        %v1470 = vmul.f32 %v1378, %v1469
        %vm1471 = vcmp.eq.f32.partialorder %v1378, inf
        %v1472 = vsel %vm1471, %v1378, %v1470
        %vm1473 = vcmp.eq.f32.partialorder %v1378, 0.0
        %v1474 = vand.u32 %v1378, 2147483648
        %v1475 = vsel %vm1473, %v1474, %v1472
        %v1476 = vrsqrt.pop %v1380
        %v1477 = vmul.f32 %v1380, %v1476
        %vm1478 = vcmp.eq.f32.partialorder %v1380, inf
        %v1479 = vsel %vm1478, %v1380, %v1477
        %vm1480 = vcmp.eq.f32.partialorder %v1380, 0.0
        %v1481 = vand.u32 %v1380, 2147483648
        %v1482 = vsel %vm1480, %v1481, %v1479
        %v1483 = vrsqrt.pop %v1382
        %v1484 = vmul.f32 %v1382, %v1483
        %vm1485 = vcmp.eq.f32.partialorder %v1382, inf
        %v1486 = vsel %vm1485, %v1382, %v1484
        %vm1487 = vcmp.eq.f32.partialorder %v1382, 0.0
        %v1488 = vand.u32 %v1382, 2147483648
        %v1489 = vsel %vm1487, %v1488, %v1486
        %v1490 = vrsqrt.pop %v1384
        %v1491 = vmul.f32 %v1384, %v1490
        %vm1492 = vcmp.eq.f32.partialorder %v1384, inf
        %v1493 = vsel %vm1492, %v1384, %v1491
        %vm1494 = vcmp.eq.f32.partialorder %v1384, 0.0
        %v1495 = vand.u32 %v1384, 2147483648
        %v1496 = vsel %vm1494, %v1495, %v1493
        %v1497 = vmax.f32 %v1391, 1e-15
        %v1498 = vmax.f32 %v1398, 1e-15
        %v1499 = vmax.f32 %v1405, 1e-15
        %v1500 = vmax.f32 %v1412, 1e-15
        %v1501 = vmax.f32 %v1419, 1e-15
        %v1502 = vmax.f32 %v1426, 1e-15
        %v1503 = vmax.f32 %v1433, 1e-15
        %v1504 = vmax.f32 %v1440, 1e-15
        %v1505 = vmax.f32 %v1447, 1e-15
        %v1506 = vmax.f32 %v1454, 1e-15
        %v1507 = vmax.f32 %v1461, 1e-15
        %v1508 = vmax.f32 %v1468, 1e-15
        %v1509 = vmax.f32 %v1475, 1e-15
        %v1510 = vmax.f32 %v1482, 1e-15
        %v1511 = vmax.f32 %v1489, 1e-15
        %v1512 = vmax.f32 %v1496, 1e-15
        %vm1513 = vcmp.gt.f32.partialorder %v1497, 9.99
        %vm1514 = vcmp.gt.f32.partialorder %v1498, 9.99
        %vm1515 = vcmp.gt.f32.partialorder %v1499, 9.99
        %vm1516 = vcmp.gt.f32.partialorder %v1500, 9.99
        %vm1517 = vcmp.gt.f32.partialorder %v1501, 9.99
        %vm1518 = vcmp.gt.f32.partialorder %v1502, 9.99
        %vm1519 = vcmp.gt.f32.partialorder %v1503, 9.99
        %vm1520 = vcmp.gt.f32.partialorder %v1504, 9.99
        %vm1521 = vcmp.gt.f32.partialorder %v1505, 9.99
        %vm1522 = vcmp.gt.f32.partialorder %v1506, 9.99
        %vm1523 = vcmp.gt.f32.partialorder %v1507, 9.99
        %vm1524 = vcmp.gt.f32.partialorder %v1508, 9.99
        %vm1525 = vcmp.gt.f32.partialorder %v1509, 9.99
        %vm1526 = vcmp.gt.f32.partialorder %v1510, 9.99
        %vm1527 = vcmp.gt.f32.partialorder %v1511, 9.99
        %vm1528 = vcmp.gt.f32.partialorder %v1512, 9.99
        %v1529 = vrcp.pop %v1497
        %v1530 = vmul.f32 %v1321, %v1529
        %v1531 = vrcp.pop %v1498
        %v1532 = vmul.f32 %v1322, %v1531
        %v1533 = vrcp.pop %v1499
        %v1534 = vmul.f32 %v1323, %v1533
        %v1535 = vrcp.pop %v1500
        %v1536 = vmul.f32 %v1324, %v1535
        %v1537 = vrcp.pop %v1501
        %v1538 = vmul.f32 %v1325, %v1537
        %v1539 = vrcp.pop %v1502
        %v1540 = vmul.f32 %v1326, %v1539
        %v1541 = vrcp.pop %v1503
        %v1542 = vmul.f32 %v1327, %v1541
        %v1543 = vrcp.pop %v1504
        %v1544 = vmul.f32 %v1328, %v1543
        %v1545 = vrcp.pop %v1505
        %v1546 = vmul.f32 %v1329, %v1545
        %v1547 = vrcp.pop %v1506
        %v1548 = vmul.f32 %v1330, %v1547
        %v1549 = vrcp.pop %v1507
        %v1550 = vmul.f32 %v1331, %v1549
        %v1551 = vrcp.pop %v1508
        %v1552 = vmul.f32 %v1332, %v1551
        %v1553 = vrcp.pop %v1509
        %v1554 = vmul.f32 %v1333, %v1553
        %v1555 = vrcp.pop %v1510
        %v1556 = vmul.f32 %v1334, %v1555
        %v1557 = vrcp.pop %v1511
        %v1558 = vmul.f32 %v1335, %v1557
        %v1559 = vrcp.pop %v1512
        %v1560 = vmul.f32 %v1336, %v1559
        %v1561 = vmul.f32 %v1530, 9.99
        %v1562 = vmul.f32 %v1532, 9.99
        %v1563 = vmul.f32 %v1534, 9.99
        %v1564 = vmul.f32 %v1536, 9.99
        %v1565 = vmul.f32 %v1538, 9.99
        %v1566 = vmul.f32 %v1540, 9.99
        %v1567 = vmul.f32 %v1542, 9.99
        %v1568 = vmul.f32 %v1544, 9.99
        %v1569 = vmul.f32 %v1546, 9.99
        %v1570 = vmul.f32 %v1548, 9.99
        %v1571 = vmul.f32 %v1550, 9.99
        %v1572 = vmul.f32 %v1552, 9.99
        %v1573 = vmul.f32 %v1554, 9.99
        %v1574 = vmul.f32 %v1556, 9.99
        %v1575 = vmul.f32 %v1558, 9.99
        %v1576 = vmul.f32 %v1560, 9.99
        %v1577 = vsel %vm1513, 1, 0
        %v1578 = vsel %vm1514, 1, 0
        %v1579 = vsel %vm1515, 1, 0
        %v1580 = vsel %vm1516, 1, 0
        %v1581 = vsel %vm1517, 1, 0
        %v1582 = vsel %vm1518, 1, 0
        %v1583 = vsel %vm1519, 1, 0
        %v1584 = vsel %vm1520, 1, 0
        %v1585 = vsel %vm1521, 1, 0
        %v1586 = vsel %vm1522, 1, 0
        %v1587 = vsel %vm1523, 1, 0
        %v1588 = vsel %vm1524, 1, 0
        %v1589 = vsel %vm1525, 1, 0
        %v1590 = vsel %vm1526, 1, 0
        %v1591 = vsel %vm1527, 1, 0
        %v1592 = vsel %vm1528, 1, 0
        %vm1593 = vcmp.eq.s32.totalorder %v1577, 1
        %vm1594 = vcmp.eq.s32.totalorder %v1578, 1
        %vm1595 = vcmp.eq.s32.totalorder %v1579, 1
        %vm1596 = vcmp.eq.s32.totalorder %v1580, 1
        %vm1597 = vcmp.eq.s32.totalorder %v1581, 1
        %vm1598 = vcmp.eq.s32.totalorder %v1582, 1
        %vm1599 = vcmp.eq.s32.totalorder %v1583, 1
        %vm1600 = vcmp.eq.s32.totalorder %v1584, 1
        %vm1601 = vcmp.eq.s32.totalorder %v1585, 1
        %vm1602 = vcmp.eq.s32.totalorder %v1586, 1
        %vm1603 = vcmp.eq.s32.totalorder %v1587, 1
        %vm1604 = vcmp.eq.s32.totalorder %v1588, 1
        %vm1605 = vcmp.eq.s32.totalorder %v1589, 1
        %vm1606 = vcmp.eq.s32.totalorder %v1590, 1
        %vm1607 = vcmp.eq.s32.totalorder %v1591, 1
        %vm1608 = vcmp.eq.s32.totalorder %v1592, 1
        %v1609 = vsel %vm1593, %v1561, %v1321
        %v1610 = vsel %vm1594, %v1562, %v1322
        %v1611 = vsel %vm1595, %v1563, %v1323
        %v1612 = vsel %vm1596, %v1564, %v1324
        %v1613 = vsel %vm1597, %v1565, %v1325
        %v1614 = vsel %vm1598, %v1566, %v1326
        %v1615 = vsel %vm1599, %v1567, %v1327
        %v1616 = vsel %vm1600, %v1568, %v1328
        %v1617 = vsel %vm1601, %v1569, %v1329
        %v1618 = vsel %vm1602, %v1570, %v1330
        %v1619 = vsel %vm1603, %v1571, %v1331
        %v1620 = vsel %vm1604, %v1572, %v1332
        %v1621 = vsel %vm1605, %v1573, %v1333
        %v1622 = vsel %vm1606, %v1574, %v1334
        %v1623 = vsel %vm1607, %v1575, %v1335
        %v1624 = vsel %vm1608, %v1576, %v1336
        %v1625 = vld [vmem:[%s3] sm:$0x1]
        %v1627 = vlaneseq
        %v1628 = vshrl.u32 %v1627, 7
        %v1629 = vsub.s32 0, %v1628
        %v1630 = vrot.slane %v1625, %v1629
        %v1632 = vmul.f32 %v1609, %v1609
        %v1633 = vmul.f32 %v1610, %v1610
        %v1634 = vmul.f32 %v1611, %v1611
        %v1635 = vmul.f32 %v1612, %v1612
        %v1636 = vmul.f32 %v1613, %v1613
        %v1637 = vmul.f32 %v1614, %v1614
        %v1638 = vmul.f32 %v1615, %v1615
        %v1639 = vmul.f32 %v1616, %v1616
        %v1640 = vmul.f32 %v1617, %v1617
        %v1641 = vmul.f32 %v1618, %v1618
        %v1642 = vmul.f32 %v1619, %v1619
        %v1643 = vmul.f32 %v1620, %v1620
        %v1644 = vmul.f32 %v1621, %v1621
        %v1645 = vmul.f32 %v1622, %v1622
        %v1646 = vmul.f32 %v1623, %v1623
        %v1647 = vmul.f32 %v1624, %v1624
        %1648 = vadd.xlane.f32.xlu0 %v1632
        %v1649 = vpop.xlane.xlu0 %1648
        %1650 = vadd.xlane.f32.xlu0 %v1633
        %v1651 = vpop.xlane.xlu0 %1650
        %1652 = vadd.xlane.f32.xlu0 %v1634
        %v1653 = vpop.xlane.xlu0 %1652
        %1654 = vadd.xlane.f32.xlu0 %v1635
        %v1655 = vpop.xlane.xlu0 %1654
        %1656 = vadd.xlane.f32.xlu0 %v1636
        %v1657 = vpop.xlane.xlu0 %1656
        %1658 = vadd.xlane.f32.xlu0 %v1637
        %v1659 = vpop.xlane.xlu0 %1658
        %1660 = vadd.xlane.f32.xlu0 %v1638
        %v1661 = vpop.xlane.xlu0 %1660
        %1662 = vadd.xlane.f32.xlu0 %v1639
        %v1663 = vpop.xlane.xlu0 %1662
        %1664 = vadd.xlane.f32.xlu0 %v1640
        %v1665 = vpop.xlane.xlu0 %1664
        %1666 = vadd.xlane.f32.xlu0 %v1641
        %v1667 = vpop.xlane.xlu0 %1666
        %1668 = vadd.xlane.f32.xlu0 %v1642
        %v1669 = vpop.xlane.xlu0 %1668
        %1670 = vadd.xlane.f32.xlu0 %v1643
        %v1671 = vpop.xlane.xlu0 %1670
        %1672 = vadd.xlane.f32.xlu0 %v1644
        %v1673 = vpop.xlane.xlu0 %1672
        %1674 = vadd.xlane.f32.xlu0 %v1645
        %v1675 = vpop.xlane.xlu0 %1674
        %1676 = vadd.xlane.f32.xlu0 %v1646
        %v1677 = vpop.xlane.xlu0 %1676
        %1678 = vadd.xlane.f32.xlu0 %v1647
        %v1679 = vpop.xlane.xlu0 %1678
        %v1680 = vmul.f32 %v1630, %v1630
        %1681 = vadd.xlane.f32.xlu0 %v1680
        %v1682 = vpop.xlane.xlu0 %1681
        %v1683 = vmul.f32 %v1609, %v1630
        %v1684 = vmul.f32 %v1610, %v1630
        %v1685 = vmul.f32 %v1611, %v1630
        %v1686 = vmul.f32 %v1612, %v1630
        %v1687 = vmul.f32 %v1613, %v1630
        %v1688 = vmul.f32 %v1614, %v1630
        %v1689 = vmul.f32 %v1615, %v1630
        %v1690 = vmul.f32 %v1616, %v1630
        %v1691 = vmul.f32 %v1617, %v1630
        %v1692 = vmul.f32 %v1618, %v1630
        %v1693 = vmul.f32 %v1619, %v1630
        %v1694 = vmul.f32 %v1620, %v1630
        %v1695 = vmul.f32 %v1621, %v1630
        %v1696 = vmul.f32 %v1622, %v1630
        %v1697 = vmul.f32 %v1623, %v1630
        %v1698 = vmul.f32 %v1624, %v1630
        %1699 = vadd.xlane.f32.xlu0 %v1683
        %v1700 = vpop.xlane.xlu0 %1699
        %1701 = vadd.xlane.f32.xlu0 %v1684
        %v1702 = vpop.xlane.xlu0 %1701
        %1703 = vadd.xlane.f32.xlu0 %v1685
        %v1704 = vpop.xlane.xlu0 %1703
        %1705 = vadd.xlane.f32.xlu0 %v1686
        %v1706 = vpop.xlane.xlu0 %1705
        %1707 = vadd.xlane.f32.xlu0 %v1687
        %v1708 = vpop.xlane.xlu0 %1707
        %1709 = vadd.xlane.f32.xlu0 %v1688
        %v1710 = vpop.xlane.xlu0 %1709
        %1711 = vadd.xlane.f32.xlu0 %v1689
        %v1712 = vpop.xlane.xlu0 %1711
        %1713 = vadd.xlane.f32.xlu0 %v1690
        %v1714 = vpop.xlane.xlu0 %1713
        %1715 = vadd.xlane.f32.xlu0 %v1691
        %v1716 = vpop.xlane.xlu0 %1715
        %1717 = vadd.xlane.f32.xlu0 %v1692
        %v1718 = vpop.xlane.xlu0 %1717
        %1719 = vadd.xlane.f32.xlu0 %v1693
        %v1720 = vpop.xlane.xlu0 %1719
        %1721 = vadd.xlane.f32.xlu0 %v1694
        %v1722 = vpop.xlane.xlu0 %1721
        %1723 = vadd.xlane.f32.xlu0 %v1695
        %v1724 = vpop.xlane.xlu0 %1723
        %1725 = vadd.xlane.f32.xlu0 %v1696
        %v1726 = vpop.xlane.xlu0 %1725
        %1727 = vadd.xlane.f32.xlu0 %v1697
        %v1728 = vpop.xlane.xlu0 %1727
        %1729 = vadd.xlane.f32.xlu0 %v1698
        %v1730 = vpop.xlane.xlu0 %1729
        %v1731 = vmul.f32 %v1700, 0.02
        %v1732 = vmul.f32 %v1702, 0.02
        %v1733 = vmul.f32 %v1704, 0.02
        %v1734 = vmul.f32 %v1706, 0.02
        %v1735 = vmul.f32 %v1708, 0.02
        %v1736 = vmul.f32 %v1710, 0.02
        %v1737 = vmul.f32 %v1712, 0.02
        %v1738 = vmul.f32 %v1714, 0.02
        %v1739 = vmul.f32 %v1716, 0.02
        %v1740 = vmul.f32 %v1718, 0.02
        %v1741 = vmul.f32 %v1720, 0.02
        %v1742 = vmul.f32 %v1722, 0.02
        %v1743 = vmul.f32 %v1724, 0.02
        %v1744 = vmul.f32 %v1726, 0.02
        %v1745 = vmul.f32 %v1728, 0.02
        %v1746 = vmul.f32 %v1730, 0.02
        %v1747 = vadd.f32 %v1731, 1.0
        %v1748 = vadd.f32 %v1732, 1.0
        %v1749 = vadd.f32 %v1733, 1.0
        %v1750 = vadd.f32 %v1734, 1.0
        %v1751 = vadd.f32 %v1735, 1.0
        %v1752 = vadd.f32 %v1736, 1.0
        %v1753 = vadd.f32 %v1737, 1.0
        %v1754 = vadd.f32 %v1738, 1.0
        %v1755 = vadd.f32 %v1739, 1.0
        %v1756 = vadd.f32 %v1740, 1.0
        %v1757 = vadd.f32 %v1741, 1.0
        %v1758 = vadd.f32 %v1742, 1.0
        %v1759 = vadd.f32 %v1743, 1.0
        %v1760 = vadd.f32 %v1744, 1.0
        %v1761 = vadd.f32 %v1745, 1.0
        %v1762 = vadd.f32 %v1746, 1.0
        %v1763 = vmul.f32 %v1682, 0.01
        %v1764 = vadd.f32 %v1747, %v1763
        %v1765 = vadd.f32 %v1748, %v1763
        %v1766 = vadd.f32 %v1749, %v1763
        %v1767 = vadd.f32 %v1750, %v1763
        %v1768 = vadd.f32 %v1751, %v1763
        %v1769 = vadd.f32 %v1752, %v1763
        %v1770 = vadd.f32 %v1753, %v1763
        %v1771 = vadd.f32 %v1754, %v1763
        %v1772 = vadd.f32 %v1755, %v1763
        %v1773 = vadd.f32 %v1756, %v1763
        %v1774 = vadd.f32 %v1757, %v1763
        %v1775 = vadd.f32 %v1758, %v1763
        %v1776 = vadd.f32 %v1759, %v1763
        %v1777 = vadd.f32 %v1760, %v1763
        %v1778 = vadd.f32 %v1761, %v1763
        %v1779 = vadd.f32 %v1762, %v1763
        %v1780 = vmul.f32 %v1764, %v1609
        %v1781 = vmul.f32 %v1765, %v1610
        %v1782 = vmul.f32 %v1766, %v1611
        %v1783 = vmul.f32 %v1767, %v1612
        %v1784 = vmul.f32 %v1768, %v1613
        %v1785 = vmul.f32 %v1769, %v1614
        %v1786 = vmul.f32 %v1770, %v1615
        %v1787 = vmul.f32 %v1771, %v1616
        %v1788 = vmul.f32 %v1772, %v1617
        %v1789 = vmul.f32 %v1773, %v1618
        %v1790 = vmul.f32 %v1774, %v1619
        %v1791 = vmul.f32 %v1775, %v1620
        %v1792 = vmul.f32 %v1776, %v1621
        %v1793 = vmul.f32 %v1777, %v1622
        %v1794 = vmul.f32 %v1778, %v1623
        %v1795 = vmul.f32 %v1779, %v1624
        %v1796 = vmul.f32 %v1649, 0.01
        %v1797 = vmul.f32 %v1651, 0.01
        %v1798 = vmul.f32 %v1653, 0.01
        %v1799 = vmul.f32 %v1655, 0.01
        %v1800 = vmul.f32 %v1657, 0.01
        %v1801 = vmul.f32 %v1659, 0.01
        %v1802 = vmul.f32 %v1661, 0.01
        %v1803 = vmul.f32 %v1663, 0.01
        %v1804 = vmul.f32 %v1665, 0.01
        %v1805 = vmul.f32 %v1667, 0.01
        %v1806 = vmul.f32 %v1669, 0.01
        %v1807 = vmul.f32 %v1671, 0.01
        %v1808 = vmul.f32 %v1673, 0.01
        %v1809 = vmul.f32 %v1675, 0.01
        %v1810 = vmul.f32 %v1677, 0.01
        %v1811 = vmul.f32 %v1679, 0.01
        %v1812 = vsub.f32 1.0, %v1796
        %v1813 = vsub.f32 1.0, %v1797
        %v1814 = vsub.f32 1.0, %v1798
        %v1815 = vsub.f32 1.0, %v1799
        %v1816 = vsub.f32 1.0, %v1800
        %v1817 = vsub.f32 1.0, %v1801
        %v1818 = vsub.f32 1.0, %v1802
        %v1819 = vsub.f32 1.0, %v1803
        %v1820 = vsub.f32 1.0, %v1804
        %v1821 = vsub.f32 1.0, %v1805
        %v1822 = vsub.f32 1.0, %v1806
        %v1823 = vsub.f32 1.0, %v1807
        %v1824 = vsub.f32 1.0, %v1808
        %v1825 = vsub.f32 1.0, %v1809
        %v1826 = vsub.f32 1.0, %v1810
        %v1827 = vsub.f32 1.0, %v1811
        %v1828 = vmul.f32 %v1812, %v1630
        %v1829 = vmul.f32 %v1813, %v1630
        %v1830 = vmul.f32 %v1814, %v1630
        %v1831 = vmul.f32 %v1815, %v1630
        %v1832 = vmul.f32 %v1816, %v1630
        %v1833 = vmul.f32 %v1817, %v1630
        %v1834 = vmul.f32 %v1818, %v1630
        %v1835 = vmul.f32 %v1819, %v1630
        %v1836 = vmul.f32 %v1820, %v1630
        %v1837 = vmul.f32 %v1821, %v1630
        %v1838 = vmul.f32 %v1822, %v1630
        %v1839 = vmul.f32 %v1823, %v1630
        %v1840 = vmul.f32 %v1824, %v1630
        %v1841 = vmul.f32 %v1825, %v1630
        %v1842 = vmul.f32 %v1826, %v1630
        %v1843 = vmul.f32 %v1827, %v1630
        %v1844 = vadd.f32 %v1780, %v1828
        %v1845 = vadd.f32 %v1781, %v1829
        %v1846 = vadd.f32 %v1782, %v1830
        %v1847 = vadd.f32 %v1783, %v1831
        %v1848 = vadd.f32 %v1784, %v1832
        %v1849 = vadd.f32 %v1785, %v1833
        %v1850 = vadd.f32 %v1786, %v1834
        %v1851 = vadd.f32 %v1787, %v1835
        %v1852 = vadd.f32 %v1788, %v1836
        %v1853 = vadd.f32 %v1789, %v1837
        %v1854 = vadd.f32 %v1790, %v1838
        %v1855 = vadd.f32 %v1791, %v1839
        %v1856 = vadd.f32 %v1792, %v1840
        %v1857 = vadd.f32 %v1793, %v1841
        %v1858 = vadd.f32 %v1794, %v1842
        %v1859 = vadd.f32 %v1795, %v1843
        %v1860 = vmul.f32 %v1649, 0.0001
        %v1861 = vmul.f32 %v1651, 0.0001
        %v1862 = vmul.f32 %v1653, 0.0001
        %v1863 = vmul.f32 %v1655, 0.0001
        %v1864 = vmul.f32 %v1657, 0.0001
        %v1865 = vmul.f32 %v1659, 0.0001
        %v1866 = vmul.f32 %v1661, 0.0001
        %v1867 = vmul.f32 %v1663, 0.0001
        %v1868 = vmul.f32 %v1665, 0.0001
        %v1869 = vmul.f32 %v1667, 0.0001
        %v1870 = vmul.f32 %v1669, 0.0001
        %v1871 = vmul.f32 %v1671, 0.0001
        %v1872 = vmul.f32 %v1673, 0.0001
        %v1873 = vmul.f32 %v1675, 0.0001
        %v1874 = vmul.f32 %v1677, 0.0001
        %v1875 = vmul.f32 %v1679, 0.0001
        %v1876 = vmul.f32 %v1860, %v1682
        %v1877 = vmul.f32 %v1861, %v1682
        %v1878 = vmul.f32 %v1862, %v1682
        %v1879 = vmul.f32 %v1863, %v1682
        %v1880 = vmul.f32 %v1864, %v1682
        %v1881 = vmul.f32 %v1865, %v1682
        %v1882 = vmul.f32 %v1866, %v1682
        %v1883 = vmul.f32 %v1867, %v1682
        %v1884 = vmul.f32 %v1868, %v1682
        %v1885 = vmul.f32 %v1869, %v1682
        %v1886 = vmul.f32 %v1870, %v1682
        %v1887 = vmul.f32 %v1871, %v1682
        %v1888 = vmul.f32 %v1872, %v1682
        %v1889 = vmul.f32 %v1873, %v1682
        %v1890 = vmul.f32 %v1874, %v1682
        %v1891 = vmul.f32 %v1875, %v1682
        %v1892 = vadd.f32 %v1747, %v1876
        %v1893 = vadd.f32 %v1748, %v1877
        %v1894 = vadd.f32 %v1749, %v1878
        %v1895 = vadd.f32 %v1750, %v1879
        %v1896 = vadd.f32 %v1751, %v1880
        %v1897 = vadd.f32 %v1752, %v1881
        %v1898 = vadd.f32 %v1753, %v1882
        %v1899 = vadd.f32 %v1754, %v1883
        %v1900 = vadd.f32 %v1755, %v1884
        %v1901 = vadd.f32 %v1756, %v1885
        %v1902 = vadd.f32 %v1757, %v1886
        %v1903 = vadd.f32 %v1758, %v1887
        %v1904 = vadd.f32 %v1759, %v1888
        %v1905 = vadd.f32 %v1760, %v1889
        %v1906 = vadd.f32 %v1761, %v1890
        %v1907 = vadd.f32 %v1762, %v1891
        %v1908 = vmax.f32 %v1892, 1e-15
        %v1909 = vmax.f32 %v1893, 1e-15
        %v1910 = vmax.f32 %v1894, 1e-15
        %v1911 = vmax.f32 %v1895, 1e-15
        %v1912 = vmax.f32 %v1896, 1e-15
        %v1913 = vmax.f32 %v1897, 1e-15
        %v1914 = vmax.f32 %v1898, 1e-15
        %v1915 = vmax.f32 %v1899, 1e-15
        %v1916 = vmax.f32 %v1900, 1e-15
        %v1917 = vmax.f32 %v1901, 1e-15
        %v1918 = vmax.f32 %v1902, 1e-15
        %v1919 = vmax.f32 %v1903, 1e-15
        %v1920 = vmax.f32 %v1904, 1e-15
        %v1921 = vmax.f32 %v1905, 1e-15
        %v1922 = vmax.f32 %v1906, 1e-15
        %v1923 = vmax.f32 %v1907, 1e-15
        %v1924 = vrcp.pop %v1908
        %v1925 = vmul.f32 %v1844, %v1924
        %v1926 = vrcp.pop %v1909
        %v1927 = vmul.f32 %v1845, %v1926
        %v1928 = vrcp.pop %v1910
        %v1929 = vmul.f32 %v1846, %v1928
        %v1930 = vrcp.pop %v1911
        %v1931 = vmul.f32 %v1847, %v1930
        %v1932 = vrcp.pop %v1912
        %v1933 = vmul.f32 %v1848, %v1932
        %v1934 = vrcp.pop %v1913
        %v1935 = vmul.f32 %v1849, %v1934
        %v1936 = vrcp.pop %v1914
        %v1937 = vmul.f32 %v1850, %v1936
        %v1938 = vrcp.pop %v1915
        %v1939 = vmul.f32 %v1851, %v1938
        %v1940 = vrcp.pop %v1916
        %v1941 = vmul.f32 %v1852, %v1940
        %v1942 = vrcp.pop %v1917
        %v1943 = vmul.f32 %v1853, %v1942
        %v1944 = vrcp.pop %v1918
        %v1945 = vmul.f32 %v1854, %v1944
        %v1946 = vrcp.pop %v1919
        %v1947 = vmul.f32 %v1855, %v1946
        %v1948 = vrcp.pop %v1920
        %v1949 = vmul.f32 %v1856, %v1948
        %v1950 = vrcp.pop %v1921
        %v1951 = vmul.f32 %v1857, %v1950
        %v1952 = vrcp.pop %v1922
        %v1953 = vmul.f32 %v1858, %v1952
        %v1954 = vrcp.pop %v1923
        %v1955 = vmul.f32 %v1859, %v1954
        %v1956 = vmul.f32 %v1925, %v1925
        %v1957 = vmul.f32 %v1927, %v1927
        %v1958 = vmul.f32 %v1929, %v1929
        %v1959 = vmul.f32 %v1931, %v1931
        %v1960 = vmul.f32 %v1933, %v1933
        %v1961 = vmul.f32 %v1935, %v1935
        %v1962 = vmul.f32 %v1937, %v1937
        %v1963 = vmul.f32 %v1939, %v1939
        %v1964 = vmul.f32 %v1941, %v1941
        %v1965 = vmul.f32 %v1943, %v1943
        %v1966 = vmul.f32 %v1945, %v1945
        %v1967 = vmul.f32 %v1947, %v1947
        %v1968 = vmul.f32 %v1949, %v1949
        %v1969 = vmul.f32 %v1951, %v1951
        %v1970 = vmul.f32 %v1953, %v1953
        %v1971 = vmul.f32 %v1955, %v1955
        %1972 = vadd.xlane.f32.xlu0 %v1956
        %v1973 = vpop.xlane.xlu0 %1972
        %1974 = vadd.xlane.f32.xlu0 %v1957
        %v1975 = vpop.xlane.xlu0 %1974
        %1976 = vadd.xlane.f32.xlu0 %v1958
        %v1977 = vpop.xlane.xlu0 %1976
        %1978 = vadd.xlane.f32.xlu0 %v1959
        %v1979 = vpop.xlane.xlu0 %1978
        %1980 = vadd.xlane.f32.xlu0 %v1960
        %v1981 = vpop.xlane.xlu0 %1980
        %1982 = vadd.xlane.f32.xlu0 %v1961
        %v1983 = vpop.xlane.xlu0 %1982
        %1984 = vadd.xlane.f32.xlu0 %v1962
        %v1985 = vpop.xlane.xlu0 %1984
        %1986 = vadd.xlane.f32.xlu0 %v1963
        %v1987 = vpop.xlane.xlu0 %1986
        %1988 = vadd.xlane.f32.xlu0 %v1964
        %v1989 = vpop.xlane.xlu0 %1988
        %1990 = vadd.xlane.f32.xlu0 %v1965
        %v1991 = vpop.xlane.xlu0 %1990
        %1992 = vadd.xlane.f32.xlu0 %v1966
        %v1993 = vpop.xlane.xlu0 %1992
        %1994 = vadd.xlane.f32.xlu0 %v1967
        %v1995 = vpop.xlane.xlu0 %1994
        %1996 = vadd.xlane.f32.xlu0 %v1968
        %v1997 = vpop.xlane.xlu0 %1996
        %1998 = vadd.xlane.f32.xlu0 %v1969
        %v1999 = vpop.xlane.xlu0 %1998
        %2000 = vadd.xlane.f32.xlu0 %v1970
        %v2001 = vpop.xlane.xlu0 %2000
        %2002 = vadd.xlane.f32.xlu0 %v1971
        %v2003 = vpop.xlane.xlu0 %2002
        %v2004 = vrsqrt.pop %v1973
        %v2005 = vmul.f32 %v1973, %v2004
        %vm2006 = vcmp.eq.f32.partialorder %v1973, inf
        %v2007 = vsel %vm2006, %v1973, %v2005
        %vm2008 = vcmp.eq.f32.partialorder %v1973, 0.0
        %v2009 = vand.u32 %v1973, 2147483648
        %v2010 = vsel %vm2008, %v2009, %v2007
        %v2011 = vrsqrt.pop %v1975
        %v2012 = vmul.f32 %v1975, %v2011
        %vm2013 = vcmp.eq.f32.partialorder %v1975, inf
        %v2014 = vsel %vm2013, %v1975, %v2012
        %vm2015 = vcmp.eq.f32.partialorder %v1975, 0.0
        %v2016 = vand.u32 %v1975, 2147483648
        %v2017 = vsel %vm2015, %v2016, %v2014
        %v2018 = vrsqrt.pop %v1977
        %v2019 = vmul.f32 %v1977, %v2018
        %vm2020 = vcmp.eq.f32.partialorder %v1977, inf
        %v2021 = vsel %vm2020, %v1977, %v2019
        %vm2022 = vcmp.eq.f32.partialorder %v1977, 0.0
        %v2023 = vand.u32 %v1977, 2147483648
        %v2024 = vsel %vm2022, %v2023, %v2021
        %v2025 = vrsqrt.pop %v1979
        %v2026 = vmul.f32 %v1979, %v2025
        %vm2027 = vcmp.eq.f32.partialorder %v1979, inf
        %v2028 = vsel %vm2027, %v1979, %v2026
        %vm2029 = vcmp.eq.f32.partialorder %v1979, 0.0
        %v2030 = vand.u32 %v1979, 2147483648
        %v2031 = vsel %vm2029, %v2030, %v2028
        %v2032 = vrsqrt.pop %v1981
        %v2033 = vmul.f32 %v1981, %v2032
        %vm2034 = vcmp.eq.f32.partialorder %v1981, inf
        %v2035 = vsel %vm2034, %v1981, %v2033
        %vm2036 = vcmp.eq.f32.partialorder %v1981, 0.0
        %v2037 = vand.u32 %v1981, 2147483648
        %v2038 = vsel %vm2036, %v2037, %v2035
        %v2039 = vrsqrt.pop %v1983
        %v2040 = vmul.f32 %v1983, %v2039
        %vm2041 = vcmp.eq.f32.partialorder %v1983, inf
        %v2042 = vsel %vm2041, %v1983, %v2040
        %vm2043 = vcmp.eq.f32.partialorder %v1983, 0.0
        %v2044 = vand.u32 %v1983, 2147483648
        %v2045 = vsel %vm2043, %v2044, %v2042
        %v2046 = vrsqrt.pop %v1985
        %v2047 = vmul.f32 %v1985, %v2046
        %vm2048 = vcmp.eq.f32.partialorder %v1985, inf
        %v2049 = vsel %vm2048, %v1985, %v2047
        %vm2050 = vcmp.eq.f32.partialorder %v1985, 0.0
        %v2051 = vand.u32 %v1985, 2147483648
        %v2052 = vsel %vm2050, %v2051, %v2049
        %v2053 = vrsqrt.pop %v1987
        %v2054 = vmul.f32 %v1987, %v2053
        %vm2055 = vcmp.eq.f32.partialorder %v1987, inf
        %v2056 = vsel %vm2055, %v1987, %v2054
        %vm2057 = vcmp.eq.f32.partialorder %v1987, 0.0
        %v2058 = vand.u32 %v1987, 2147483648
        %v2059 = vsel %vm2057, %v2058, %v2056
        %v2060 = vrsqrt.pop %v1989
        %v2061 = vmul.f32 %v1989, %v2060
        %vm2062 = vcmp.eq.f32.partialorder %v1989, inf
        %v2063 = vsel %vm2062, %v1989, %v2061
        %vm2064 = vcmp.eq.f32.partialorder %v1989, 0.0
        %v2065 = vand.u32 %v1989, 2147483648
        %v2066 = vsel %vm2064, %v2065, %v2063
        %v2067 = vrsqrt.pop %v1991
        %v2068 = vmul.f32 %v1991, %v2067
        %vm2069 = vcmp.eq.f32.partialorder %v1991, inf
        %v2070 = vsel %vm2069, %v1991, %v2068
        %vm2071 = vcmp.eq.f32.partialorder %v1991, 0.0
        %v2072 = vand.u32 %v1991, 2147483648
        %v2073 = vsel %vm2071, %v2072, %v2070
        %v2074 = vrsqrt.pop %v1993
        %v2075 = vmul.f32 %v1993, %v2074
        %vm2076 = vcmp.eq.f32.partialorder %v1993, inf
        %v2077 = vsel %vm2076, %v1993, %v2075
        %vm2078 = vcmp.eq.f32.partialorder %v1993, 0.0
        %v2079 = vand.u32 %v1993, 2147483648
        %v2080 = vsel %vm2078, %v2079, %v2077
        %v2081 = vrsqrt.pop %v1995
        %v2082 = vmul.f32 %v1995, %v2081
        %vm2083 = vcmp.eq.f32.partialorder %v1995, inf
        %v2084 = vsel %vm2083, %v1995, %v2082
        %vm2085 = vcmp.eq.f32.partialorder %v1995, 0.0
        %v2086 = vand.u32 %v1995, 2147483648
        %v2087 = vsel %vm2085, %v2086, %v2084
        %v2088 = vrsqrt.pop %v1997
        %v2089 = vmul.f32 %v1997, %v2088
        %vm2090 = vcmp.eq.f32.partialorder %v1997, inf
        %v2091 = vsel %vm2090, %v1997, %v2089
        %vm2092 = vcmp.eq.f32.partialorder %v1997, 0.0
        %v2093 = vand.u32 %v1997, 2147483648
        %v2094 = vsel %vm2092, %v2093, %v2091
        %v2095 = vrsqrt.pop %v1999
        %v2096 = vmul.f32 %v1999, %v2095
        %vm2097 = vcmp.eq.f32.partialorder %v1999, inf
        %v2098 = vsel %vm2097, %v1999, %v2096
        %vm2099 = vcmp.eq.f32.partialorder %v1999, 0.0
        %v2100 = vand.u32 %v1999, 2147483648
        %v2101 = vsel %vm2099, %v2100, %v2098
        %v2102 = vrsqrt.pop %v2001
        %v2103 = vmul.f32 %v2001, %v2102
        %vm2104 = vcmp.eq.f32.partialorder %v2001, inf
        %v2105 = vsel %vm2104, %v2001, %v2103
        %vm2106 = vcmp.eq.f32.partialorder %v2001, 0.0
        %v2107 = vand.u32 %v2001, 2147483648
        %v2108 = vsel %vm2106, %v2107, %v2105
        %v2109 = vrsqrt.pop %v2003
        %v2110 = vmul.f32 %v2003, %v2109
        %vm2111 = vcmp.eq.f32.partialorder %v2003, inf
        %v2112 = vsel %vm2111, %v2003, %v2110
        %vm2113 = vcmp.eq.f32.partialorder %v2003, 0.0
        %v2114 = vand.u32 %v2003, 2147483648
        %v2115 = vsel %vm2113, %v2114, %v2112
        %v2116 = vmax.f32 %v2010, 1e-15
        %v2117 = vmax.f32 %v2017, 1e-15
        %v2118 = vmax.f32 %v2024, 1e-15
        %v2119 = vmax.f32 %v2031, 1e-15
        %v2120 = vmax.f32 %v2038, 1e-15
        %v2121 = vmax.f32 %v2045, 1e-15
        %v2122 = vmax.f32 %v2052, 1e-15
        %v2123 = vmax.f32 %v2059, 1e-15
        %v2124 = vmax.f32 %v2066, 1e-15
        %v2125 = vmax.f32 %v2073, 1e-15
        %v2126 = vmax.f32 %v2080, 1e-15
        %v2127 = vmax.f32 %v2087, 1e-15
        %v2128 = vmax.f32 %v2094, 1e-15
        %v2129 = vmax.f32 %v2101, 1e-15
        %v2130 = vmax.f32 %v2108, 1e-15
        %v2131 = vmax.f32 %v2115, 1e-15
        %vm2132 = vcmp.gt.f32.partialorder %v2116, 9.99
        %vm2133 = vcmp.gt.f32.partialorder %v2117, 9.99
        %vm2134 = vcmp.gt.f32.partialorder %v2118, 9.99
        %vm2135 = vcmp.gt.f32.partialorder %v2119, 9.99
        %vm2136 = vcmp.gt.f32.partialorder %v2120, 9.99
        %vm2137 = vcmp.gt.f32.partialorder %v2121, 9.99
        %vm2138 = vcmp.gt.f32.partialorder %v2122, 9.99
        %vm2139 = vcmp.gt.f32.partialorder %v2123, 9.99
        %vm2140 = vcmp.gt.f32.partialorder %v2124, 9.99
        %vm2141 = vcmp.gt.f32.partialorder %v2125, 9.99
        %vm2142 = vcmp.gt.f32.partialorder %v2126, 9.99
        %vm2143 = vcmp.gt.f32.partialorder %v2127, 9.99
        %vm2144 = vcmp.gt.f32.partialorder %v2128, 9.99
        %vm2145 = vcmp.gt.f32.partialorder %v2129, 9.99
        %vm2146 = vcmp.gt.f32.partialorder %v2130, 9.99
        %vm2147 = vcmp.gt.f32.partialorder %v2131, 9.99
        %v2148 = vrcp.pop %v2116
        %v2149 = vmul.f32 %v1925, %v2148
        %v2150 = vrcp.pop %v2117
        %v2151 = vmul.f32 %v1927, %v2150
        %v2152 = vrcp.pop %v2118
        %v2153 = vmul.f32 %v1929, %v2152
        %v2154 = vrcp.pop %v2119
        %v2155 = vmul.f32 %v1931, %v2154
        %v2156 = vrcp.pop %v2120
        %v2157 = vmul.f32 %v1933, %v2156
        %v2158 = vrcp.pop %v2121
        %v2159 = vmul.f32 %v1935, %v2158
        %v2160 = vrcp.pop %v2122
        %v2161 = vmul.f32 %v1937, %v2160
        %v2162 = vrcp.pop %v2123
        %v2163 = vmul.f32 %v1939, %v2162
        %v2164 = vrcp.pop %v2124
        %v2165 = vmul.f32 %v1941, %v2164
        %v2166 = vrcp.pop %v2125
        %v2167 = vmul.f32 %v1943, %v2166
        %v2168 = vrcp.pop %v2126
        %v2169 = vmul.f32 %v1945, %v2168
        %v2170 = vrcp.pop %v2127
        %v2171 = vmul.f32 %v1947, %v2170
        %v2172 = vrcp.pop %v2128
        %v2173 = vmul.f32 %v1949, %v2172
        %v2174 = vrcp.pop %v2129
        %v2175 = vmul.f32 %v1951, %v2174
        %v2176 = vrcp.pop %v2130
        %v2177 = vmul.f32 %v1953, %v2176
        %v2178 = vrcp.pop %v2131
        %v2179 = vmul.f32 %v1955, %v2178
        %v2180 = vmul.f32 %v2149, 9.99
        %v2181 = vmul.f32 %v2151, 9.99
        %v2182 = vmul.f32 %v2153, 9.99
        %v2183 = vmul.f32 %v2155, 9.99
        %v2184 = vmul.f32 %v2157, 9.99
        %v2185 = vmul.f32 %v2159, 9.99
        %v2186 = vmul.f32 %v2161, 9.99
        %v2187 = vmul.f32 %v2163, 9.99
        %v2188 = vmul.f32 %v2165, 9.99
        %v2189 = vmul.f32 %v2167, 9.99
        %v2190 = vmul.f32 %v2169, 9.99
        %v2191 = vmul.f32 %v2171, 9.99
        %v2192 = vmul.f32 %v2173, 9.99
        %v2193 = vmul.f32 %v2175, 9.99
        %v2194 = vmul.f32 %v2177, 9.99
        %v2195 = vmul.f32 %v2179, 9.99
        %v2196 = vsel %vm2132, 1, 0
        %v2197 = vsel %vm2133, 1, 0
        %v2198 = vsel %vm2134, 1, 0
        %v2199 = vsel %vm2135, 1, 0
        %v2200 = vsel %vm2136, 1, 0
        %v2201 = vsel %vm2137, 1, 0
        %v2202 = vsel %vm2138, 1, 0
        %v2203 = vsel %vm2139, 1, 0
        %v2204 = vsel %vm2140, 1, 0
        %v2205 = vsel %vm2141, 1, 0
        %v2206 = vsel %vm2142, 1, 0
        %v2207 = vsel %vm2143, 1, 0
        %v2208 = vsel %vm2144, 1, 0
        %v2209 = vsel %vm2145, 1, 0
        %v2210 = vsel %vm2146, 1, 0
        %v2211 = vsel %vm2147, 1, 0
        %vm2212 = vcmp.eq.s32.totalorder %v2196, 1
        %vm2213 = vcmp.eq.s32.totalorder %v2197, 1
        %vm2214 = vcmp.eq.s32.totalorder %v2198, 1
        %vm2215 = vcmp.eq.s32.totalorder %v2199, 1
        %vm2216 = vcmp.eq.s32.totalorder %v2200, 1
        %vm2217 = vcmp.eq.s32.totalorder %v2201, 1
        %vm2218 = vcmp.eq.s32.totalorder %v2202, 1
        %vm2219 = vcmp.eq.s32.totalorder %v2203, 1
        %vm2220 = vcmp.eq.s32.totalorder %v2204, 1
        %vm2221 = vcmp.eq.s32.totalorder %v2205, 1
        %vm2222 = vcmp.eq.s32.totalorder %v2206, 1
        %vm2223 = vcmp.eq.s32.totalorder %v2207, 1
        %vm2224 = vcmp.eq.s32.totalorder %v2208, 1
        %vm2225 = vcmp.eq.s32.totalorder %v2209, 1
        %vm2226 = vcmp.eq.s32.totalorder %v2210, 1
        %vm2227 = vcmp.eq.s32.totalorder %v2211, 1
        %v2228 = vsel %vm2212, %v2180, %v1925
        %v2229 = vsel %vm2213, %v2181, %v1927
        %v2230 = vsel %vm2214, %v2182, %v1929
        %v2231 = vsel %vm2215, %v2183, %v1931
        %v2232 = vsel %vm2216, %v2184, %v1933
        %v2233 = vsel %vm2217, %v2185, %v1935
        %v2234 = vsel %vm2218, %v2186, %v1937
        %v2235 = vsel %vm2219, %v2187, %v1939
        %v2236 = vsel %vm2220, %v2188, %v1941
        %v2237 = vsel %vm2221, %v2189, %v1943
        %v2238 = vsel %vm2222, %v2190, %v1945
        %v2239 = vsel %vm2223, %v2191, %v1947
        %v2240 = vsel %vm2224, %v2192, %v1949
        %v2241 = vsel %vm2225, %v2193, %v1951
        %v2242 = vsel %vm2226, %v2194, %v1953
        %v2243 = vsel %vm2227, %v2195, %v1955
        %2244 = vst [vmem:[%s244] sm:$0xff] %v2228
        %2245 = vst [vmem:[%s244 + $0x8] sm:$0xff] %v2229
        %2246 = vst [vmem:[%s244 + $0x10] sm:$0xff] %v2230
        %2247 = vst [vmem:[%s244 + $0x18] sm:$0xff] %v2231
        %2248 = vst [vmem:[%s244 + $0x20] sm:$0xff] %v2232
        %2249 = vst [vmem:[%s244 + $0x28] sm:$0xff] %v2233
        %2250 = vst [vmem:[%s244 + $0x30] sm:$0xff] %v2234
        %2251 = vst [vmem:[%s244 + $0x38] sm:$0xff] %v2235
        %2252 = vst [vmem:[%s244 + $0x40] sm:$0xff] %v2236
        %2253 = vst [vmem:[%s244 + $0x48] sm:$0xff] %v2237
        %2254 = vst [vmem:[%s244 + $0x50] sm:$0xff] %v2238
        %2255 = vst [vmem:[%s244 + $0x58] sm:$0xff] %v2239
        %2256 = vst [vmem:[%s244 + $0x60] sm:$0xff] %v2240
        %2257 = vst [vmem:[%s244 + $0x68] sm:$0xff] %v2241
        %2258 = vst [vmem:[%s244 + $0x70] sm:$0xff] %v2242
        %2259 = vst [vmem:[%s244 + $0x78] sm:$0xff] %v2243
        %s2260 = sand.u32 %s119, 1
        %s2261 = scalar_lea.sflag [#allocation4], %s2260
        %s2262 = sand.u32 %s119, 1
        %s2263 = smul.addr %s2262, 128
        %s2264 = scalar_lea.vmem [#allocation8], %s2263
        // Predicated region
        $region49: #{tpu_custom_call.1} parent=35 // pred_check
          %p2265 = pneg %p129
        $region50: #{tpu_custom_call.1} parent=35 // pred_check_branch
          %2267 = sbr.rel (%p2265) target = $region52
        $region51: #{tpu_custom_call.1} parent=35 // pred_region
          %s2268 = smul.u32 16, %s22
          %s2270 = ssub.s32 2048, 2048
          %2271 = vsyncadd %s2261, %s2270
          %s2272 = smul.addr %s2268, 128
          %s2273 = scalar_lea.hbm %s4, %s2272
          %s2274 = sshll.u32 %s2264, 4
          %s2275 = int_to_ptr.vmem [resolvable:$true] %s2274
          %2280 = dma.vmem_to_hbm [thread:$0]  %s2275, 2048, %s2273, %s2261, 128, 128, 8
        $region52: #{tpu_custom_call.1} parent=35 // pred_fallthru
          _
      $region36: #{tpu_custom_call.1} parent=5 // pred_fallthru
        _
      %p2281 = scmp.le.s32.totalorder 2, %s17
      // Predicated region
      $region53: #{tpu_custom_call.1} parent=5 // pred_check
        %p2282 = pneg %p2281
      $region54: #{tpu_custom_call.1} parent=5 // pred_check_branch
        %2284 = sbr.rel (%p2282) target = $region56
      $region55: #{tpu_custom_call.1} parent=5 // pred_region
        %s2285 = ssub.s32 %s17, 2
        // Predicated region
        $region57: #{tpu_custom_call.1} parent=55 // pred_check
          %p2286 = pneg %p135
        $region58: #{tpu_custom_call.1} parent=55 // pred_check_branch
          %2288 = sbr.rel (%p2286) target = $region60
        $region59: #{tpu_custom_call.1} parent=55 // pred_region
          %s2289 = sand.u32 %s120, 1
          %s2290 = scalar_lea.sflag [#allocation4], %s2289
          %s2291 = sand.u32 %s120, 1
          %s2292 = smul.addr %s2291, 128
          %s2293 = scalar_lea.vmem [#allocation8], %s2292
          %2294 = dma.done %s2290, 2048
        $region60: #{tpu_custom_call.1} parent=55 // pred_fallthru
          _
      $region56: #{tpu_custom_call.1} parent=5 // pred_fallthru
        _
    $region6: #{tpu_custom_call.1} parent=1 // loop_footer
      %s21 = sadd.s32 1, %s17
    $region7: #{tpu_custom_call.1} parent=1 // loop_footer_branch
      %16 = sbr.rel target = $region3
    $region8: #{tpu_custom_call.1} parent=1 // loop_exit
      _
    %2295 = vsyncpa [#allocation3], 1
    %s2296 = scalar_lea.sflag [#allocation3], 1
    %2297 = vsyncpa %s2296, 1
    %2298 = vsyncpa [#allocation6], 1
    %2299 = vsyncpa [#allocation4], 1
    %s2300 = scalar_lea.sflag [#allocation4], 1
    %2301 = vsyncpa %s2300, 1

</llo_original>
